<compile_context>
chip_gen: v6e
topology: v6e:2x2x1
jax: 0.10.0
libtpu: 0.0.40
codegen_flags: <defaults>
</compile_context>

<pallas_src>
import functools

import jax
import jax.numpy as jnp
import numpy as np
from jax.experimental import pallas as pl
from jax.experimental.pallas import tpu as pltpu


# ---------------------------------------------------------------------------
# Kernels
# ---------------------------------------------------------------------------

def _train_fused_kernel(inv_count_ref, batch_ref, sum_ref, sq_ref,
                        out_ref, nsum_ref, nsq_ref, *, epsilon_sq):
    """Single-pass training: the full batch is resident per D-tile, so we
    update acc_sum / acc_squared_sum and normalize with the *updated* stats in
    one read + one write of the batch."""
    b = batch_ref[...].astype(jnp.float32)                       # (B, TILE_D)
    inv_count = inv_count_ref[0, 0]                              # 1/max(count,1)

    new_sum = sum_ref[...] + jnp.sum(b, axis=0, keepdims=True)   # (1, TILE_D)
    new_sq = sq_ref[...] + jnp.sum(b * b, axis=0, keepdims=True)
    nsum_ref[...] = new_sum
    nsq_ref[...] = new_sq

    mean = new_sum * inv_count
    var = new_sq * inv_count - mean * mean
    # 1 / max(sqrt(max(var,0)), eps)  ==  rsqrt(max(var, eps^2)) -> one EUP op
    inv_std = jax.lax.rsqrt(jnp.maximum(var, jnp.float32(epsilon_sq)))
    out_ref[...] = ((b - mean) * inv_std).astype(out_ref.dtype)


def _stats_kernel(batch_ref, sum_ref, sq_ref, nsum_ref, nsq_ref,
                  *, batch_size, tile_b):
    """Phase 1 of the large-B training path: accumulate per-feature sums over
    B tiles.  grid = (D_tiles, B_tiles); B is the trailing 'arbitrary' axis so
    nsum/nsq stay resident as accumulators across the B sweep."""
    bi = pl.program_id(1)
    x = batch_ref[...].astype(jnp.float32)                       # (tile_b, TILE_D)
    if batch_size % tile_b != 0:
        # mask garbage rows of the ragged boundary B block out of the reduction
        row = jax.lax.broadcasted_iota(jnp.int32, x.shape, 0) + bi * tile_b
        x = jnp.where(row < batch_size, x, jnp.float32(0.0))

    @pl.when(bi == 0)
    def _():
        nsum_ref[...] = sum_ref[...]
        nsq_ref[...] = sq_ref[...]

    nsum_ref[...] += jnp.sum(x, axis=0, keepdims=True)
    nsq_ref[...] += jnp.sum(x * x, axis=0, keepdims=True)


def _normalize_kernel(inv_count_ref, batch_ref, sum_ref, sq_ref, out_ref,
                      *, epsilon_sq):
    """Eval / phase-2 normalization with fixed statistics."""
    b = batch_ref[...].astype(jnp.float32)
    inv_count = inv_count_ref[0, 0]
    mean = sum_ref[...] * inv_count
    var = sq_ref[...] * inv_count - mean * mean
    inv_std = jax.lax.rsqrt(jnp.maximum(var, jnp.float32(epsilon_sq)))
    out_ref[...] = ((b - mean) * inv_std).astype(out_ref.dtype)


# ---------------------------------------------------------------------------
# Tiling helpers
# ---------------------------------------------------------------------------

def _round_down(x, m):
    return (x // m) * m


def _round_up(x, m):
    return -(-x // m) * m


def _vmem_budget():
    """(per-step working-set budget, scoped vmem_limit_bytes) per generation."""
    cap = 64 << 20                      # conservative default (v7x-like)
    try:
        info = pltpu.get_tpu_info()
        cap = getattr(info, "vmem_capacity_bytes", cap) or cap
    except Exception:
        pass
    if cap >= (100 << 20):              # v5e / v6e: 128 MiB physical VMEM
        return 32 << 20, 64 << 20
    return 16 << 20, 32 << 20           # v7x: 64 MiB physical VMEM


def _pick_tile_d(batch_rows, d, itemsize, budget):
    """Largest lane-dense D tile with the full batch per block, such that the
    double-buffered (in + out) tiles stay under `budget`; split so a v7x
    megacore gets >= 2 blocks when possible."""
    if d <= 128:
        return d                         # block last dim == full array dim
    per_lane = 4 * batch_rows * itemsize              # 2 bufs x (in + out)
    max_lanes = max(128, budget // max(per_lane, 1))
    d_ceil = _round_up(d, 128)
    tile = min(d_ceil, _round_down(max_lanes, 128))
    # single-block D leaves one v7x TensorCore idle -> split into >= 2 blocks
    if tile >= d_ceil and d_ceil > 128:
        tile = _round_up(d_ceil // 2, 128)
    return tile


def _pick_tiles(batch_rows, d, itemsize, budget):
    """Returns (tile_b, tile_d).  Prefers a full-batch block (tile_b == B); if
    that cannot fit even at 128 lanes, tiles the batch dim in multiples of 8."""
    tile_d_min = d if d <= 128 else 128
    if 4 * batch_rows * tile_d_min * itemsize <= budget:
        return batch_rows, _pick_tile_d(batch_rows, d, itemsize, budget)
    # batch dim must be tiled; keep DMA rows long but >= 8 rows per tile
    tile_d = tile_d_min
    if d > 128:
        tile_d = min(_round_up(d, 128), 2048)
        while tile_d > 128 and budget // (4 * tile_d * itemsize) < 8:
            tile_d -= 128
    tile_b = _round_down(max(budget // (4 * tile_d * itemsize), 8), 8)
    return min(tile_b, batch_rows), tile_d


# ---------------------------------------------------------------------------
# Wrapper
# ---------------------------------------------------------------------------

def _normalize_call(inv_count, batch, sum2d, sq2d, *, eps_sq, budget,
                    vmem_limit, out_dtype):
    B, D = batch.shape
    itemsize = jnp.dtype(out_dtype).itemsize
    tile_b, tile_d = _pick_tiles(B, D, itemsize, budget)
    grid = (pl.cdiv(B, tile_b), pl.cdiv(D, tile_d))
    return pl.pallas_call(
        functools.partial(_normalize_kernel, epsilon_sq=eps_sq),
        grid=grid,
        in_specs=[
            pl.BlockSpec((1, 1), lambda i, j: (0, 0), memory_space=pltpu.SMEM),
            pl.BlockSpec((tile_b, tile_d), lambda i, j: (i, j)),
            pl.BlockSpec((1, tile_d), lambda i, j: (0, j)),
            pl.BlockSpec((1, tile_d), lambda i, j: (0, j)),
        ],
        out_specs=pl.BlockSpec((tile_b, tile_d), lambda i, j: (i, j)),
        out_shape=jax.ShapeDtypeStruct((B, D), out_dtype),
        compiler_params=pltpu.CompilerParams(
            dimension_semantics=("parallel", "parallel"),
            vmem_limit_bytes=vmem_limit),
    )(inv_count, batch, sum2d, sq2d)


def _accumulated_normalization_impl(batch, acc_sum, acc_squared_sum, acc_count,
                                    num_accumulations, *, training, epsilon,
                                    budget_override):
    B, D = batch.shape
    out_dtype = batch.dtype
    itemsize = jnp.dtype(out_dtype).itemsize

    acc_sum = acc_sum.astype(jnp.float32)
    acc_squared_sum = acc_squared_sum.astype(jnp.float32)
    acc_count = acc_count.astype(jnp.float32).reshape(1)
    num_accumulations = num_accumulations.astype(jnp.float32).reshape(1)

    # O(1) scalar bookkeeping done once in plain JAX (not in the kernel).
    if training:
        new_count = acc_count + jnp.float32(B)
        new_nacc = num_accumulations + jnp.float32(1.0)
    else:
        new_count = acc_count
        new_nacc = num_accumulations
    inv_count = (jnp.float32(1.0) / jnp.maximum(new_count, 1.0)).reshape(1, 1)

    # metadata-only reshapes (no HBM round trip, unlike the old jnp.pad path)
    sum2d = acc_sum.reshape(1, D)
    sq2d = acc_squared_sum.reshape(1, D)

    budget, vmem_limit = _vmem_budget()
    if budget_override is not None:
        budget = int(budget_override)
    eps_sq = float(epsilon) * float(epsilon)

    if not training:
        out = _normalize_call(inv_count, batch, sum2d, sq2d, eps_sq=eps_sq,
                              budget=budget, vmem_limit=vmem_limit,
                              out_dtype=out_dtype)
        return out, acc_sum, acc_squared_sum, new_count, new_nacc

    tile_d_min = D if D <= 128 else 128
    fused_fits = 4 * B * tile_d_min * itemsize <= budget

    if fused_fits:
        # ---- single-pass fused path: one read + one write of the batch ----
        tile_d = _pick_tile_d(B, D, itemsize, budget)
        grid = (pl.cdiv(D, tile_d),)
        mat_spec = pl.BlockSpec((B, tile_d), lambda j: (0, j))
        row_spec = pl.BlockSpec((1, tile_d), lambda j: (0, j))
        out, nsum2d, nsq2d = pl.pallas_call(
            functools.partial(_train_fused_kernel, epsilon_sq=eps_sq),
            grid=grid,
            in_specs=[
                pl.BlockSpec((1, 1), lambda j: (0, 0), memory_space=pltpu.SMEM),
                mat_spec, row_spec, row_spec,
            ],
            out_specs=[mat_spec, row_spec, row_spec],
            out_shape=[
                jax.ShapeDtypeStruct((B, D), out_dtype),
                jax.ShapeDtypeStruct((1, D), jnp.float32),
                jax.ShapeDtypeStruct((1, D), jnp.float32),
            ],
            # in-place running-buffer update (effective when the caller donates)
            input_output_aliases={2: 1, 3: 2},
            compiler_params=pltpu.CompilerParams(
                dimension_semantics=("parallel",),
                vmem_limit_bytes=vmem_limit),
        )(inv_count, batch, sum2d, sq2d)
    else:
        # ---- large-B two-phase path: B-tiled stats reduction + normalize ----
        tile_b, tile_d = _pick_tiles(B, D, itemsize, budget)
        grid = (pl.cdiv(D, tile_d), pl.cdiv(B, tile_b))
        row_spec = pl.BlockSpec((1, tile_d), lambda d, b: (0, d))
        nsum2d, nsq2d = pl.pallas_call(
            functools.partial(_stats_kernel, batch_size=B, tile_b=tile_b),
            grid=grid,
            in_specs=[
                pl.BlockSpec((tile_b, tile_d), lambda d, b: (b, d)),
                row_spec, row_spec,
            ],
            out_specs=[row_spec, row_spec],
            out_shape=[
                jax.ShapeDtypeStruct((1, D), jnp.float32),
                jax.ShapeDtypeStruct((1, D), jnp.float32),
            ],
            input_output_aliases={1: 0, 2: 1},
            compiler_params=pltpu.CompilerParams(
                dimension_semantics=("parallel", "arbitrary"),
                vmem_limit_bytes=vmem_limit),
        )(batch, sum2d, sq2d)
        out = _normalize_call(inv_count, batch, nsum2d, nsq2d, eps_sq=eps_sq,
                              budget=budget, vmem_limit=vmem_limit,
                              out_dtype=out_dtype)

    return out, nsum2d.reshape(D), nsq2d.reshape(D), new_count, new_nacc


@functools.partial(jax.jit,
                   static_argnames=("training", "epsilon", "budget_override"),
                   donate_argnames=("acc_sum", "acc_squared_sum"))
def accumulated_normalization(batch, acc_sum, acc_squared_sum, acc_count,
                              num_accumulations, *, training,
                              epsilon=1e-8, budget_override=None):
    """Returns (normalized_batch, new_acc_sum, new_acc_squared_sum,
                new_acc_count, new_num_accumulations)."""
    return _accumulated_normalization_impl(
        batch, acc_sum, acc_squared_sum, acc_count, num_accumulations,
        training=training, epsilon=epsilon, budget_override=budget_override)


# ---------------------------------------------------------------------------
# Reference + tests
# ---------------------------------------------------------------------------

def _reference(batch, acc_sum, acc_sq, acc_count, num_acc, training, eps=1e-8):
    batch = np.asarray(batch, np.float32)
    acc_sum = np.asarray(acc_sum, np.float32).copy()
    acc_sq = np.asarray(acc_sq, np.float32).copy()
    acc_count = np.asarray(acc_count, np.float32).copy()
    num_acc = np.asarray(num_acc, np.float32).copy()
    if training:
        acc_sum += batch.sum(axis=0)
        acc_sq += (batch ** 2).sum(axis=0)
        acc_count += batch.shape[0]
        num_acc += 1
    count_safe = np.maximum(acc_count, 1.0)
    mean = acc_sum / count_safe
    std = np.maximum(np.sqrt(acc_sq / count_safe - mean ** 2), eps)
    return (batch - mean) / std, acc_sum, acc_sq, acc_count, num_acc


if __name__ == "__main__":
    # accumulator_shape = (D,) — running stats over the feature dim.
    # D=300 exercises the ragged (non-128-multiple) boundary-block path.
    B, D = 8, 300
    key = jax.random.PRNGKey(0)
    batch = jax.random.normal(key, (B, D), dtype=jnp.float32) * 2.0 + 0.5
    batch_np = np.asarray(batch)

    acc_sum0 = np.zeros((D,), np.float32)
    acc_sq0 = np.zeros((D,), np.float32)
    cnt0 = np.zeros((1,), np.float32)
    nacc0 = np.zeros((1,), np.float32)

    # training=True: fused single-pass kernel, updated stats, in-place alias.
    out, nsum, nsq, ncount, nnacc = accumulated_normalization(
        batch, jnp.asarray(acc_sum0), jnp.asarray(acc_sq0),
        jnp.asarray(cnt0), jnp.asarray(nacc0), training=True)
    jax.block_until_ready(out)

    ref_out, ref_sum, ref_sq, ref_cnt, ref_nacc = _reference(
        batch_np, acc_sum0, acc_sq0, cnt0, nacc0, training=True)
    np.testing.assert_allclose(np.asarray(out), ref_out, rtol=1e-5, atol=1e-5)
    np.testing.assert_allclose(np.asarray(nsum), ref_sum, rtol=1e-5, atol=1e-5)
    np.testing.assert_allclose(np.asarray(nsq), ref_sq, rtol=1e-5, atol=1e-5)
    np.testing.assert_allclose(np.asarray(ncount), ref_cnt)
    np.testing.assert_allclose(np.asarray(nnacc), ref_nacc)

    # snapshot before the eval call donates these buffers
    nsum_np, nsq_np = np.asarray(nsum), np.asarray(nsq)
    ncount_np, nnacc_np = np.asarray(ncount), np.asarray(nnacc)

    # eval path: normalize with existing stats; buffers pass through unchanged.
    out_eval, esum, esq, ecount, enacc = accumulated_normalization(
        batch, nsum, nsq, ncount, nnacc, training=False)
    jax.block_until_ready(out_eval)
    ref_eval, *_ = _reference(batch_np, nsum_np, nsq_np, ncount_np, nnacc_np,
                              training=False)
    np.testing.assert_allclose(np.asarray(out_eval), ref_eval,
                               rtol=1e-5, atol=1e-5)
    np.testing.assert_allclose(np.asarray(esum), nsum_np, rtol=1e-6, atol=1e-6)
    np.testing.assert_allclose(np.asarray(esq), nsq_np, rtol=1e-6, atol=1e-6)
    np.testing.assert_allclose(np.asarray(ecount), ncount_np)
    np.testing.assert_allclose(np.asarray(enacc), nnacc_np)

    # bf16 I/O (f32 compute), D multiple of 128: no boundary blocks.
    D2 = 256
    batch_bf16 = jax.random.normal(jax.random.PRNGKey(1), (B, D2)).astype(jnp.bfloat16)
    out_bf16, *_ = accumulated_normalization(
        batch_bf16, jnp.zeros((D2,)), jnp.zeros((D2,)),
        jnp.zeros((1,)), jnp.zeros((1,)), training=True)
    jax.block_until_ready(out_bf16)
    assert out_bf16.dtype == jnp.bfloat16 and out_bf16.shape == (B, D2)
    ref_bf16, *_ = _reference(np.asarray(batch_bf16, np.float32),
                              np.zeros((D2,)), np.zeros((D2,)),
                              np.zeros((1,)), np.zeros((1,)), training=True)
    np.testing.assert_allclose(np.asarray(out_bf16, np.float32), ref_bf16,
                               rtol=2e-2, atol=2e-2)

    # Force the large-B two-phase training path (B-tiled stats reduction +
    # B-tiled normalize) on small shapes via a tiny per-step budget override.
    B3, D3 = 20, 384
    batch3 = jax.random.normal(jax.random.PRNGKey(2), (B3, D3), jnp.float32)
    s3_0 = np.ones((D3,), np.float32)
    q3_0 = np.full((D3,), 2.0, np.float32)
    c3_0 = np.full((1,), 5.0, np.float32)
    n3_0 = np.full((1,), 3.0, np.float32)
    out3, s3, q3, c3, n3 = accumulated_normalization(
        batch3, jnp.asarray(s3_0), jnp.asarray(q3_0), jnp.asarray(c3_0),
        jnp.asarray(n3_0), training=True, budget_override=32 * 1024)
    jax.block_until_ready(out3)
    r_out3, r_s3, r_q3, r_c3, r_n3 = _reference(
        np.asarray(batch3), s3_0, q3_0, c3_0, n3_0, training=True)
    np.testing.assert_allclose(np.asarray(out3), r_out3, rtol=1e-5, atol=1e-5)
    np.testing.assert_allclose(np.asarray(s3), r_s3, rtol=1e-5, atol=1e-5)
    np.testing.assert_allclose(np.asarray(q3), r_q3, rtol=1e-5, atol=1e-5)
    np.testing.assert_allclose(np.asarray(c3), r_c3)
    np.testing.assert_allclose(np.asarray(n3), r_n3)

    print("KERNEL_OK")
</pallas_src>

<mosaic_0001>
module attributes {stable_mosaic.version = 11 : i64} {
  func.func @_train_fused_kernel(%arg0: i32, %arg1: memref<1x1xf32, #tpu.memory_space<smem>>, %arg2: memref<8x256xf32, #tpu.memory_space<vmem>>, %arg3: memref<1x256xf32, #tpu.memory_space<vmem>>, %arg4: memref<1x256xf32, #tpu.memory_space<vmem>>, %arg5: memref<8x256xf32, #tpu.memory_space<vmem>>, %arg6: memref<1x256xf32, #tpu.memory_space<vmem>>, %arg7: memref<1x256xf32, #tpu.memory_space<vmem>>) attributes {dimension_semantics = [#tpu.dimension_semantics<parallel>], iteration_bounds = array<i64: 2>, scalar_prefetch = 0 : i64, scratch_operands = 0 : i64, tpu.core_type = #tpu.core_type<tc>, window_params = [{transform_indices = @transform_0, window_bounds = array<i64: 1, 1>}, {transform_indices = @transform_1, window_bounds = array<i64: 8, 256>}, {transform_indices = @transform_2, window_bounds = array<i64: 1, 256>}, {transform_indices = @transform_3, window_bounds = array<i64: 1, 256>}, {transform_indices = @transform_4, window_bounds = array<i64: 8, 256>}, {transform_indices = @transform_5, window_bounds = array<i64: 1, 256>}, {transform_indices = @transform_6, window_bounds = array<i64: 1, 256>}]} {
    %c0 = arith.constant 0 : index
    %c0_0 = arith.constant 0 : index
    %0 = vector.load %arg2[%c0, %c0_0] : memref<8x256xf32, #tpu.memory_space<vmem>>, vector<8x256xf32>
    %c0_1 = arith.constant 0 : index
    %c0_2 = arith.constant 0 : index
    %1 = memref.load %arg1[%c0_1, %c0_2] : memref<1x1xf32, #tpu.memory_space<smem>>
    %c0_3 = arith.constant 0 : index
    %c0_4 = arith.constant 0 : index
    %2 = vector.load %arg3[%c0_3, %c0_4] : memref<1x256xf32, #tpu.memory_space<vmem>>, vector<1x256xf32>
    %cst = arith.constant dense<0.000000e+00> : vector<256xf32>
    %3 = vector.multi_reduction <add>, %0, %cst [0] : vector<8x256xf32> to vector<256xf32>
    %4 = vector.shape_cast %3 : vector<256xf32> to vector<1x256xf32>
    %5 = arith.addf %2, %4 : vector<1x256xf32>
    %c0_5 = arith.constant 0 : index
    %c0_6 = arith.constant 0 : index
    %6 = vector.load %arg4[%c0_5, %c0_6] : memref<1x256xf32, #tpu.memory_space<vmem>>, vector<1x256xf32>
    %7 = arith.mulf %0, %0 : vector<8x256xf32>
    %cst_7 = arith.constant dense<0.000000e+00> : vector<256xf32>
    %8 = vector.multi_reduction <add>, %7, %cst_7 [0] : vector<8x256xf32> to vector<256xf32>
    %9 = vector.shape_cast %8 : vector<256xf32> to vector<1x256xf32>
    %10 = arith.addf %6, %9 : vector<1x256xf32>
    %c0_8 = arith.constant 0 : index
    %c0_9 = arith.constant 0 : index
    %11 = vector.load %arg6[%c0_8, %c0_9] : memref<1x256xf32, #tpu.memory_space<vmem>>, vector<1x256xf32>
    tpu.vector_store %arg6[%c0_8, %c0_9], %5 {strides = array<i32>} : memref<1x256xf32, #tpu.memory_space<vmem>>, vector<1x256xf32>,
    %c0_10 = arith.constant 0 : index
    %c0_11 = arith.constant 0 : index
    %12 = vector.load %arg7[%c0_10, %c0_11] : memref<1x256xf32, #tpu.memory_space<vmem>>, vector<1x256xf32>
    tpu.vector_store %arg7[%c0_10, %c0_11], %10 {strides = array<i32>} : memref<1x256xf32, #tpu.memory_space<vmem>>, vector<1x256xf32>,
    %13 = vector.broadcast %1 : f32 to vector<1x256xf32>
    %14 = arith.mulf %5, %13 : vector<1x256xf32>
    %15 = vector.broadcast %1 : f32 to vector<1x256xf32>
    %16 = arith.mulf %10, %15 : vector<1x256xf32>
    %17 = arith.mulf %14, %14 : vector<1x256xf32>
    %18 = arith.subf %16, %17 : vector<1x256xf32>
    %cst_12 = arith.constant 1.000000e-16 : f32
    %19 = vector.broadcast %cst_12 : f32 to vector<1x256xf32>
    %20 = arith.maximumf %18, %19 : vector<1x256xf32>
    %21 = math.rsqrt %20 : vector<1x256xf32>
    %22 = vector.broadcast %14 : vector<1x256xf32> to vector<8x256xf32>
    %23 = arith.subf %0, %22 : vector<8x256xf32>
    %24 = vector.broadcast %21 : vector<1x256xf32> to vector<8x256xf32>
    %25 = arith.mulf %23, %24 : vector<8x256xf32>
    %c0_13 = arith.constant 0 : index
    %c0_14 = arith.constant 0 : index
    %26 = vector.load %arg5[%c0_13, %c0_14] : memref<8x256xf32, #tpu.memory_space<vmem>>, vector<8x256xf32>
    tpu.vector_store %arg5[%c0_13, %c0_14], %25 {strides = array<i32>} : memref<8x256xf32, #tpu.memory_space<vmem>>, vector<8x256xf32>,
    return
  }
  func.func @transform_0(%arg0: i32) -> (i32, i32) {
    %c0_i32 = arith.constant 0 : i32
    %c0_i32_0 = arith.constant 0 : i32
    %c0_i32_1 = arith.constant 0 : i32
    return %c0_i32, %c0_i32_0 : i32, i32
  }
  func.func @transform_1(%arg0: i32) -> (i32, i32) {
    %c0_i32 = arith.constant 0 : i32
    %c0_i32_0 = arith.constant 0 : i32
    return %c0_i32, %arg0 : i32, i32
  }
  func.func @transform_2(%arg0: i32) -> (i32, i32) {
    %c0_i32 = arith.constant 0 : i32
    %c0_i32_0 = arith.constant 0 : i32
    return %c0_i32, %arg0 : i32, i32
  }
  func.func @transform_3(%arg0: i32) -> (i32, i32) {
    %c0_i32 = arith.constant 0 : i32
    %c0_i32_0 = arith.constant 0 : i32
    return %c0_i32, %arg0 : i32, i32
  }
  func.func @transform_4(%arg0: i32) -> (i32, i32) {
    %c0_i32 = arith.constant 0 : i32
    %c0_i32_0 = arith.constant 0 : i32
    return %c0_i32, %arg0 : i32, i32
  }
  func.func @transform_5(%arg0: i32) -> (i32, i32) {
    %c0_i32 = arith.constant 0 : i32
    %c0_i32_0 = arith.constant 0 : i32
    return %c0_i32, %arg0 : i32, i32
  }
  func.func @transform_6(%arg0: i32) -> (i32, i32) {
    %c0_i32 = arith.constant 0 : i32
    %c0_i32_0 = arith.constant 0 : i32
    return %c0_i32, %arg0 : i32, i32
  }
}

</mosaic_0001>

<llo_original>
// kernel: accumulated_normalization.1
$region0: #{accumulated_normalization.1}
  #allocation0 [shape = 'u32[]', space=smem, size = 0x4, offset = 0x4, fixed_abs, tag = 'smem constant byte address 0x4 - core index']
  #allocation1 [shape = 'u32[144,128]{1,0:T(1,128)}', space=vmem, size = 0x12000, scoped, tag = 'internal scratch']
  #allocation2 [shape = 'f32[1,1]{1,0:T(1,128)S(6)}', space=smem, size = 0x200, scoped, tag = 'scoped memory for accumulated_normalization.1']
  %s0 = inlined_call_operand.<no memory space> [shape: f32[1,1], index: 0, kind: input, shape index: {}]
  %s1 = inlined_call_operand.vmem [shape: f32[8,300], index: 1, kind: input, shape index: {}]
  %s2 = inlined_call_operand.vmem [shape: f32[1,300], index: 2, kind: input, shape index: {}, may-alias: {2,5}]
  %s3 = inlined_call_operand.vmem [shape: f32[1,300], index: 3, kind: input, shape index: {}, may-alias: {3,6}]
  %s4 = inlined_call_operand.hbm [shape: f32[8,300], index: 4, kind: output, shape index: {0}]
  %s5 = inlined_call_operand.vmem [shape: f32[1,300], index: 5, kind: output, shape index: {1}, may-alias: {2,5}]
  %s6 = inlined_call_operand.vmem [shape: f32[1,300], index: 6, kind: output, shape index: {2}, may-alias: {3,6}]
  %7 = xla_tuple %s4, %s5, %s6
  %s8 = sld [smem:[#allocation0]]
  $region189: #{accumulated_normalization.1} parent=0
    _
  %s10 = ssub.s32 1, %s8
  %s11 = scalar_select 0, %s10, %s8
  %12 = sst [smem:[#allocation2]] %s0
  $region1: #{accumulated_normalization.1} parent=0
    #allocation3 [shape = 'u8[16384]{0}', space=vmem, size = 0x4000, scoped, tag = 'output window, operand 0']
    #allocation4 [shape = 's32[2]{0}', space=sflag, size = 0x8, scoped, tag = 'scoped memory for accumulated_normalization.1']
    #allocation5 [shape = 'u8[2048]{0}', space=vmem, size = 0x800, scoped, tag = 'output window, operand 1']
    #allocation6 [shape = 'u8[2048]{0}', space=vmem, size = 0x800, scoped, tag = 'output window, operand 2']
    %13 = vsyncpa [#allocation4], 0
    %s14 = scalar_lea.sflag [#allocation4], 1
    %15 = vsyncpa %s14, 0
    loop: start=0, step=1, limit=4
    $region2: #{accumulated_normalization.1} parent=1 // loop_pre_header
      _
    $region3: #{accumulated_normalization.1} parent=1 // loop_header
      %s17 = sphi 0, %s21
      %p18 = scmp.ge.s32.totalorder %s17, 4
      %s25 = sphi 0, %s25
      %s27 = sphi 0, %s25
      %s28 = sphi 0, %s27
      %s42 = sphi 0, %s28
      %s48 = sphi 0, %s50
      %s51 = sphi 0, %s48
      %s52 = sphi 0, %s51
      %s68 = sphi 0, %s52
      %s74 = sphi 0, %s76
      %s77 = sphi 0, %s74
      %s78 = sphi 0, %s77
      %s94 = sphi 0, %s78
      %s100 = sphi 0, %s102
      %s103 = sphi 0, %s100
      %s104 = sphi 0, %s103
      %s120 = sphi 0, %s104
      %s126 = sphi 0, %s128
      %s129 = sphi 0, %s126
      %s130 = sphi 0, %s129
      %s146 = sphi 0, %s130
      %s152 = sphi 0, %s154
      %s155 = sphi 0, %s152
      %s156 = sphi 0, %s155
      %s172 = sphi 0, %s156
      %s178 = sphi 0, %s180
      %s181 = sphi 0, %s178
      %s182 = sphi 0, %s181
      %s198 = sphi 0, %s182
    $region4: #{accumulated_normalization.1} parent=1 // loop_header_branch
      %20 = sbr.rel (%p18) target = $region8
    $region5: #{accumulated_normalization.1} parent=1 // loop_body
      %s22 = ssub.s32 %s17, 1
      %s23 = ssub.s32 %s17, 2
      %s24 = sadd.s32 %s17, 1
      %s26 = sadd.s32 %s25, 1
      %p29 = scmp.eq.s32.totalorder %s17, 1
      %p30 = scmp.ne.s32.totalorder %s25, %s27
      %p31 = scmp.eq.s32.totalorder %s17, 0
      %p32 = por %p30, %p31
      %p33 = scmp.ne.s32.totalorder %s25, %s27
      %p34 = scmp.eq.s32.totalorder %s22, 1
      %p35 = por %p33, %p34
      %p36 = scmp.ne.s32.totalorder %s27, %s28
      %p37 = scmp.eq.s32.totalorder %s22, 0
      %p38 = por %p36, %p37
      %p39 = scmp.ne.s32.totalorder %s27, %s28
      %p40 = scmp.eq.s32.totalorder %s23, 1
      %p41 = por %p39, %p40
      %p43 = scmp.ne.s32.totalorder %s28, %s42
      %p44 = scmp.eq.s32.totalorder %s23, 0
      %p45 = por %p43, %p44
      %s46 = ssub.s32 %s17, %s24
      %p47 = scmp.eq.s32.totalorder %s46, 0
      %s49 = sadd.s32 %s48, 1
      %s50 = scalar_select %p47, %s48, %s49
      %p53 = pneg %p47
      %p54 = scmp.eq.s32.totalorder %s17, 1
      %p55 = por %p53, %p54
      %p56 = scmp.ne.s32.totalorder %s48, %s51
      %p57 = scmp.eq.s32.totalorder %s17, 0
      %p58 = por %p56, %p57
      %p59 = scmp.ne.s32.totalorder %s48, %s51
      %p60 = scmp.eq.s32.totalorder %s22, 1
      %p61 = por %p59, %p60
      %p62 = scmp.ne.s32.totalorder %s51, %s52
      %p63 = scmp.eq.s32.totalorder %s22, 0
      %p64 = por %p62, %p63
      %p65 = scmp.ne.s32.totalorder %s51, %s52
      %p66 = scmp.eq.s32.totalorder %s23, 1
      %p67 = por %p65, %p66
      %p69 = scmp.ne.s32.totalorder %s52, %s68
      %p70 = scmp.eq.s32.totalorder %s23, 0
      %p71 = por %p69, %p70
      %s72 = ssub.s32 %s17, %s24
      %p73 = scmp.eq.s32.totalorder %s72, 0
      %s75 = sadd.s32 %s74, 1
      %s76 = scalar_select %p73, %s74, %s75
      %p79 = pneg %p73
      %p80 = scmp.eq.s32.totalorder %s17, 1
      %p81 = por %p79, %p80
      %p82 = scmp.ne.s32.totalorder %s74, %s77
      %p83 = scmp.eq.s32.totalorder %s17, 0
      %p84 = por %p82, %p83
      %p85 = scmp.ne.s32.totalorder %s74, %s77
      %p86 = scmp.eq.s32.totalorder %s22, 1
      %p87 = por %p85, %p86
      %p88 = scmp.ne.s32.totalorder %s77, %s78
      %p89 = scmp.eq.s32.totalorder %s22, 0
      %p90 = por %p88, %p89
      %p91 = scmp.ne.s32.totalorder %s77, %s78
      %p92 = scmp.eq.s32.totalorder %s23, 1
      %p93 = por %p91, %p92
      %p95 = scmp.ne.s32.totalorder %s78, %s94
      %p96 = scmp.eq.s32.totalorder %s23, 0
      %p97 = por %p95, %p96
      %s98 = ssub.s32 %s17, %s24
      %p99 = scmp.eq.s32.totalorder %s98, 0
      %s101 = sadd.s32 %s100, 1
      %s102 = scalar_select %p99, %s100, %s101
      %p105 = pneg %p99
      %p106 = scmp.eq.s32.totalorder %s17, 1
      %p107 = por %p105, %p106
      %p108 = scmp.ne.s32.totalorder %s100, %s103
      %p109 = scmp.eq.s32.totalorder %s17, 0
      %p110 = por %p108, %p109
      %p111 = scmp.ne.s32.totalorder %s100, %s103
      %p112 = scmp.eq.s32.totalorder %s22, 1
      %p113 = por %p111, %p112
      %p114 = scmp.ne.s32.totalorder %s103, %s104
      %p115 = scmp.eq.s32.totalorder %s22, 0
      %p116 = por %p114, %p115
      %p117 = scmp.ne.s32.totalorder %s103, %s104
      %p118 = scmp.eq.s32.totalorder %s23, 1
      %p119 = por %p117, %p118
      %p121 = scmp.ne.s32.totalorder %s104, %s120
      %p122 = scmp.eq.s32.totalorder %s23, 0
      %p123 = por %p121, %p122
      %s124 = ssub.s32 %s17, %s24
      %p125 = scmp.eq.s32.totalorder %s124, 0
      %s127 = sadd.s32 %s126, 1
      %s128 = scalar_select %p125, %s126, %s127
      %p131 = pneg %p125
      %p132 = scmp.eq.s32.totalorder %s17, 1
      %p133 = por %p131, %p132
      %p134 = scmp.ne.s32.totalorder %s126, %s129
      %p135 = scmp.eq.s32.totalorder %s17, 0
      %p136 = por %p134, %p135
      %p137 = scmp.ne.s32.totalorder %s126, %s129
      %p138 = scmp.eq.s32.totalorder %s22, 1
      %p139 = por %p137, %p138
      %p140 = scmp.ne.s32.totalorder %s129, %s130
      %p141 = scmp.eq.s32.totalorder %s22, 0
      %p142 = por %p140, %p141
      %p143 = scmp.ne.s32.totalorder %s129, %s130
      %p144 = scmp.eq.s32.totalorder %s23, 1
      %p145 = por %p143, %p144
      %p147 = scmp.ne.s32.totalorder %s130, %s146
      %p148 = scmp.eq.s32.totalorder %s23, 0
      %p149 = por %p147, %p148
      %s150 = ssub.s32 %s17, %s24
      %p151 = scmp.eq.s32.totalorder %s150, 0
      %s153 = sadd.s32 %s152, 1
      %s154 = scalar_select %p151, %s152, %s153
      %p157 = pneg %p151
      %p158 = scmp.eq.s32.totalorder %s17, 1
      %p159 = por %p157, %p158
      %p160 = scmp.ne.s32.totalorder %s152, %s155
      %p161 = scmp.eq.s32.totalorder %s17, 0
      %p162 = por %p160, %p161
      %p163 = scmp.ne.s32.totalorder %s152, %s155
      %p164 = scmp.eq.s32.totalorder %s22, 1
      %p165 = por %p163, %p164
      %p166 = scmp.ne.s32.totalorder %s155, %s156
      %p167 = scmp.eq.s32.totalorder %s22, 0
      %p168 = por %p166, %p167
      %p169 = scmp.ne.s32.totalorder %s155, %s156
      %p170 = scmp.eq.s32.totalorder %s23, 1
      %p171 = por %p169, %p170
      %p173 = scmp.ne.s32.totalorder %s156, %s172
      %p174 = scmp.eq.s32.totalorder %s23, 0
      %p175 = por %p173, %p174
      %s176 = ssub.s32 %s17, %s24
      %p177 = scmp.eq.s32.totalorder %s176, 0
      %s179 = sadd.s32 %s178, 1
      %s180 = scalar_select %p177, %s178, %s179
      %p183 = pneg %p177
      %p184 = scmp.eq.s32.totalorder %s17, 1
      %p185 = por %p183, %p184
      %p186 = scmp.ne.s32.totalorder %s178, %s181
      %p187 = scmp.eq.s32.totalorder %s17, 0
      %p188 = por %p186, %p187
      %p189 = scmp.ne.s32.totalorder %s178, %s181
      %p190 = scmp.eq.s32.totalorder %s22, 1
      %p191 = por %p189, %p190
      %p192 = scmp.ne.s32.totalorder %s181, %s182
      %p193 = scmp.eq.s32.totalorder %s22, 0
      %p194 = por %p192, %p193
      %p195 = scmp.ne.s32.totalorder %s181, %s182
      %p196 = scmp.eq.s32.totalorder %s23, 1
      %p197 = por %p195, %p196
      %p199 = scmp.ne.s32.totalorder %s182, %s198
      %p200 = scmp.eq.s32.totalorder %s23, 0
      %p201 = por %p199, %p200
      %p202 = scmp.le.s32.totalorder 1, %s17
      %p203 = scmp.lt.s32.totalorder %s17, 3
      %p204 = pnand %p202, %p203
      %p205 = pneg %p204
      // Predicated region
      $region9: #{accumulated_normalization.1} parent=5 // pred_check
        _
      $region10: #{accumulated_normalization.1} parent=5 // pred_check_branch
        %207 = sbr.rel (%p204) target = $region12
      $region11: #{accumulated_normalization.1} parent=5 // pred_region
        %s208 = ssub.s32 %s17, 1
        // Predicated region
        $region13: #{accumulated_normalization.1} parent=11 // pred_check
          %p209 = pneg %p38
        $region14: #{accumulated_normalization.1} parent=11 // pred_check_branch
          %211 = sbr.rel (%p209) target = $region16
        $region15: #{accumulated_normalization.1} parent=11 // pred_region
          _
        $region16: #{accumulated_normalization.1} parent=11 // pred_fallthru
          _
      $region12: #{accumulated_normalization.1} parent=5 // pred_fallthru
        _
      %p212 = scmp.lt.s32.totalorder %s17, 2
      // Predicated region
      $region17: #{accumulated_normalization.1} parent=5 // pred_check
        %p213 = pneg %p212
      $region18: #{accumulated_normalization.1} parent=5 // pred_check_branch
        %215 = sbr.rel (%p213) target = $region20
      $region19: #{accumulated_normalization.1} parent=5 // pred_region
        // Predicated region
        $region21: #{accumulated_normalization.1} parent=19 // pred_check
          %p216 = pneg %p58
        $region22: #{accumulated_normalization.1} parent=19 // pred_check_branch
          %218 = sbr.rel (%p216) target = $region24
        $region23: #{accumulated_normalization.1} parent=19 // pred_region
          %s219 = smul.u32 2, %s17
          %s220 = ssub.s32 3, %s219
          %p221 = scmp.lt.s32.totalorder %s220, 2
          %s222 = scalar_select %p221, %s220, 2
          %s223 = smul.u32 128, %s222
          %p224 = scmp.lt.s32.totalorder %s219, 2
          %s225 = scalar_select %p224, %s219, 2
          %s226 = smul.addr %s225, 8
          %s227 = scalar_lea.vmem %s1, %s226
          %s228 = smul.u32 2, %s17
          %s229 = ssub.s32 3, %s228
          %p230 = scmp.lt.s32.totalorder %s229, 2
          %s231 = scalar_select %p230, %s229, 2
          %s232 = smul.u32 128, %s231
        $region24: #{accumulated_normalization.1} parent=19 // pred_fallthru
          _
        // Predicated region
        $region25: #{accumulated_normalization.1} parent=19 // pred_check
          %p233 = pneg %p84
        $region26: #{accumulated_normalization.1} parent=19 // pred_check_branch
          %235 = sbr.rel (%p233) target = $region28
        $region27: #{accumulated_normalization.1} parent=19 // pred_region
          %s236 = smul.u32 2, %s17
          %s237 = ssub.s32 3, %s236
          %p238 = scmp.lt.s32.totalorder %s237, 2
          %s239 = scalar_select %p238, %s237, 2
          %s240 = smul.u32 16, %s239
          %p241 = scmp.lt.s32.totalorder %s236, 2
          %s242 = scalar_select %p241, %s236, 2
          %s243 = scalar_lea.vmem %s2, %s242
          %s244 = smul.u32 2, %s17
          %s245 = ssub.s32 3, %s244
          %p246 = scmp.lt.s32.totalorder %s245, 2
          %s247 = scalar_select %p246, %s245, 2
          %s248 = smul.u32 16, %s247
        $region28: #{accumulated_normalization.1} parent=19 // pred_fallthru
          _
        // Predicated region
        $region29: #{accumulated_normalization.1} parent=19 // pred_check
          %p249 = pneg %p110
        $region30: #{accumulated_normalization.1} parent=19 // pred_check_branch
          %251 = sbr.rel (%p249) target = $region32
        $region31: #{accumulated_normalization.1} parent=19 // pred_region
          %s252 = smul.u32 2, %s17
          %s253 = ssub.s32 3, %s252
          %p254 = scmp.lt.s32.totalorder %s253, 2
          %s255 = scalar_select %p254, %s253, 2
          %s256 = smul.u32 16, %s255
          %p257 = scmp.lt.s32.totalorder %s252, 2
          %s258 = scalar_select %p257, %s252, 2
          %s259 = scalar_lea.vmem %s3, %s258
          %s260 = smul.u32 2, %s17
          %s261 = ssub.s32 3, %s260
          %p262 = scmp.lt.s32.totalorder %s261, 2
          %s263 = scalar_select %p262, %s261, 2
          %s264 = smul.u32 16, %s263
        $region32: #{accumulated_normalization.1} parent=19 // pred_fallthru
          _
      $region20: #{accumulated_normalization.1} parent=5 // pred_fallthru
        _
      %p265 = scmp.le.s32.totalorder 1, %s17
      %p266 = scmp.lt.s32.totalorder %s17, 3
      %p267 = pnand %p265, %p266
      %p268 = pneg %p267
      // Predicated region
      $region33: #{accumulated_normalization.1} parent=5 // pred_check
        _
      $region34: #{accumulated_normalization.1} parent=5 // pred_check_branch
        %270 = sbr.rel (%p267) target = $region36
      $region35: #{accumulated_normalization.1} parent=5 // pred_region
        %s271 = ssub.s32 %s17, 1
        %p272 = pneg %p38
        %p273 = pneg %p35
        %s274 = smul.u32 2, %s22
        %s275 = ssub.s32 3, %s274
        %p276 = scmp.lt.s32.totalorder %s275, 2
        %s277 = scalar_select %p276, %s275, 2
        %s278 = smul.u32 128, %s277
        %p279 = scmp.lt.s32.totalorder %s274, 2
        %s280 = scalar_select %p279, %s274, 2
        %s281 = smul.addr %s280, 8
        %s282 = scalar_lea.vmem %s1, %s281
        %p283 = pneg %p64
        %p284 = pneg %p61
        %s285 = smul.u32 2, %s22
        %s286 = ssub.s32 3, %s285
        %p287 = scmp.lt.s32.totalorder %s286, 2
        %s288 = scalar_select %p287, %s286, 2
        %s289 = smul.u32 16, %s288
        %p290 = scmp.lt.s32.totalorder %s285, 2
        %s291 = scalar_select %p290, %s285, 2
        %s292 = scalar_lea.vmem %s2, %s291
        %p293 = pneg %p90
        %p294 = pneg %p87
        %s295 = smul.u32 2, %s22
        %s296 = ssub.s32 3, %s295
        %p297 = scmp.lt.s32.totalorder %s296, 2
        %s298 = scalar_select %p297, %s296, 2
        %s299 = smul.u32 16, %s298
        %p300 = scmp.lt.s32.totalorder %s295, 2
        %s301 = scalar_select %p300, %s295, 2
        %s302 = scalar_lea.vmem %s3, %s301
        %p303 = pneg %p116
        %p304 = pneg %p113
        %p305 = pneg %p142
        %p306 = pneg %p139
        %s307 = sand.u32 %s129, 1
        %s308 = scalar_lea.sflag [#allocation4], %s307
        %s309 = sand.u32 %s129, 1
        %s310 = smul.addr %s309, 16
        %s311 = scalar_lea.vmem [#allocation3], %s310
        %p312 = pneg %p168
        %p313 = pneg %p165
        %s314 = sand.u32 %s155, 1
        %s315 = sand.u32 %s155, 1
        %s316 = smul.addr %s315, 2
        %s317 = scalar_lea.vmem [#allocation5], %s316
        %p318 = pneg %p194
        %p319 = pneg %p191
        %s320 = sand.u32 %s181, 1
        %s321 = sand.u32 %s181, 1
        %s322 = smul.addr %s321, 2
        %s323 = scalar_lea.vmem [#allocation6], %s322
        %s324 = smul.u32 2, %s22
        %s325 = ssub.s32 3, %s324
        %p326 = scmp.lt.s32.totalorder %s325, 2
        %s327 = scalar_select %p326, %s325, 2
        %s328 = smul.u32 128, %s327
        %p329 = scmp.lt.s32.totalorder %s324, 2
        %s330 = scalar_select %p329, %s324, 2
        %s331 = smul.addr %s330, 8
        %s332 = scalar_lea.vmem %s1, %s331
        %s333 = smul.u32 2, %s22
        %s334 = ssub.s32 3, %s333
        %p335 = scmp.lt.s32.totalorder %s334, 2
        %s336 = scalar_select %p335, %s334, 2
        %s337 = smul.u32 128, %s336
        %s338 = smul.u32 2, %s22
        %s339 = ssub.s32 3, %s338
        %p340 = scmp.lt.s32.totalorder %s339, 2
        %s341 = scalar_select %p340, %s339, 2
        %s342 = smul.u32 16, %s341
        %p343 = scmp.lt.s32.totalorder %s338, 2
        %s344 = scalar_select %p343, %s338, 2
        %s345 = scalar_lea.vmem %s2, %s344
        %s346 = smul.u32 2, %s22
        %s347 = ssub.s32 3, %s346
        %p348 = scmp.lt.s32.totalorder %s347, 2
        %s349 = scalar_select %p348, %s347, 2
        %s350 = smul.u32 16, %s349
        %s351 = smul.u32 2, %s22
        %s352 = ssub.s32 3, %s351
        %p353 = scmp.lt.s32.totalorder %s352, 2
        %s354 = scalar_select %p353, %s352, 2
        %s355 = smul.u32 16, %s354
        %p356 = scmp.lt.s32.totalorder %s351, 2
        %s357 = scalar_select %p356, %s351, 2
        %s358 = scalar_lea.vmem %s3, %s357
        %s359 = smul.u32 2, %s22
        %s360 = ssub.s32 3, %s359
        %p361 = scmp.lt.s32.totalorder %s360, 2
        %s362 = scalar_select %p361, %s360, 2
        %s363 = smul.u32 16, %s362
        %s364 = smul.u32 2, %s22
        %s365 = ssub.s32 3, %s364
        %p366 = scmp.lt.s32.totalorder %s365, 2
        %s367 = scalar_select %p366, %s365, 2
        %s368 = smul.u32 128, %s367
        %s369 = smul.u32 2, %s22
        %s370 = ssub.s32 3, %s369
        %p371 = scmp.lt.s32.totalorder %s370, 2
        %s372 = scalar_select %p371, %s370, 2
        %s373 = smul.u32 16, %s372
        %s374 = smul.u32 2, %s22
        %s375 = ssub.s32 3, %s374
        %p376 = scmp.lt.s32.totalorder %s375, 2
        %s377 = scalar_select %p376, %s375, 2
        %s378 = smul.u32 16, %s377
        %v379 = vld [vmem:[%s332] sm:$0xff]
        %v380 = vld [vmem:[%s332 + $0x8] sm:$0xff]
        %s381 = sld [smem:[#allocation2]]
        %v382 = vld [vmem:[%s345] sm:$0x3]
        %v383 = vrot.slane %v379, 4
        %v384 = vadd.f32 %v379, %v383
        %v385 = vrot.slane %v384, 2
        %v386 = vadd.f32 %v384, %v385
        %v387 = vrot.slane %v386, 1
        %v388 = vadd.f32 %v386, %v387
        %v389 = vrot.slane %v380, 4
        %v390 = vadd.f32 %v380, %v389
        %v391 = vrot.slane %v390, 2
        %v392 = vadd.f32 %v390, %v391
        %v393 = vrot.slane %v392, 1
        %v394 = vadd.f32 %v392, %v393
        %v397 = vcombine.low %v388, %v394
        %v399 = vunpack.c.l.s4 1966171168
        %v400 = vunpack.c.0.s8 %v399
        %v401 = vlaneseq
        %v402 = vshrl.u32 %v401, 7
        %v403 = vsub.s32 %v400, %v402
        %v404 = vrot.slane %v397, %v403
        %v406 = vunpack.c.l.s4 1966171168
        %v407 = vunpack.c.0.s8 %v406
        %v408 = vlaneseq
        %v409 = vshrl.u32 %v408, 7
        %v410 = vsub.s32 %v407, %v409
        %v411 = vrot.slane %v404, %v410
        %v413 = vadd.f32 %v382, %v411
        %v414 = vld [vmem:[%s358] sm:$0x3]
        %v415 = vmul.f32 %v379, %v379
        %v416 = vmul.f32 %v380, %v380
        %v417 = vrot.slane %v415, 4
        %v418 = vadd.f32 %v415, %v417
        %v419 = vrot.slane %v418, 2
        %v420 = vadd.f32 %v418, %v419
        %v421 = vrot.slane %v420, 1
        %v422 = vadd.f32 %v420, %v421
        %v423 = vrot.slane %v416, 4
        %v424 = vadd.f32 %v416, %v423
        %v425 = vrot.slane %v424, 2
        %v426 = vadd.f32 %v424, %v425
        %v427 = vrot.slane %v426, 1
        %v428 = vadd.f32 %v426, %v427
        %v431 = vcombine.low %v422, %v428
        %v433 = vunpack.c.l.s4 1966171168
        %v434 = vunpack.c.0.s8 %v433
        %v435 = vlaneseq
        %v436 = vshrl.u32 %v435, 7
        %v437 = vsub.s32 %v434, %v436
        %v438 = vrot.slane %v431, %v437
        %v440 = vunpack.c.l.s4 1966171168
        %v441 = vunpack.c.0.s8 %v440
        %v442 = vlaneseq
        %v443 = vshrl.u32 %v442, 7
        %v444 = vsub.s32 %v441, %v443
        %v445 = vrot.slane %v438, %v444
        %v447 = vadd.f32 %v414, %v445
        %v448 = vlaneseq
        %vm449 = vcmp.ge.s32.totalorder %v448, 0
        %vm450 = vcmp.lt.s32.totalorder %v448, 256
        %vm451 = vmand %vm449, %vm450
        %452 = vst.msk [vmem:[%s317] sm:$0x3] %vm451, %v413
        %453 = vst.msk [vmem:[%s323] sm:$0x3] %vm451, %v447
        %v454 = vstv %s381
        %v455 = vmul.f32 %v413, %v454
        %v456 = vmul.f32 %v447, %v454
        %v457 = vmul.f32 %v455, %v455
        %v458 = vsub.f32 %v456, %v457
        %v459 = vmax.f32 %v458, 1e-16
        %v460 = vrsqrt.pop %v459
        %v462 = vlaneseq
        %v463 = vshrl.u32 %v462, 7
        %v464 = vsub.s32 0, %v463
        %v465 = vrot.slane %v455, %v464
        %v466 = vlaneseq
        %v467 = vshrl.u32 %v466, 7
        %v468 = vsub.s32 1, %v467
        %v469 = vrot.slane %v455, %v468
        %v472 = vsub.f32 %v379, %v465
        %v473 = vsub.f32 %v380, %v469
        %v475 = vlaneseq
        %v476 = vshrl.u32 %v475, 7
        %v477 = vsub.s32 0, %v476
        %v478 = vrot.slane %v460, %v477
        %v479 = vlaneseq
        %v480 = vshrl.u32 %v479, 7
        %v481 = vsub.s32 1, %v480
        %v482 = vrot.slane %v460, %v481
        %v485 = vmul.f32 %v472, %v478
        %v486 = vmul.f32 %v473, %v482
        %487 = vst [vmem:[%s311] sm:$0xff] %v485
        %488 = vst [vmem:[%s311 + $0x8] sm:$0xff] %v486
        %s489 = sand.u32 %s129, 1
        %s490 = scalar_lea.sflag [#allocation4], %s489
        %s491 = sand.u32 %s129, 1
        %s492 = smul.addr %s491, 16
        %s493 = scalar_lea.vmem [#allocation3], %s492
        %s494 = sand.u32 %s155, 1
        %s495 = sand.u32 %s155, 1
        %s496 = smul.addr %s495, 2
        %s497 = scalar_lea.vmem [#allocation5], %s496
        %s498 = sand.u32 %s181, 1
        %s499 = sand.u32 %s181, 1
        %s500 = smul.addr %s499, 2
        %s501 = scalar_lea.vmem [#allocation6], %s500
        // Predicated region
        $region37: #{accumulated_normalization.1} parent=35 // pred_check
          %p502 = pneg %p139
        $region38: #{accumulated_normalization.1} parent=35 // pred_check_branch
          %504 = sbr.rel (%p502) target = $region40
        $region39: #{accumulated_normalization.1} parent=35 // pred_region
          %s505 = smul.u32 2, %s22
          %s506 = ssub.s32 3, %s505
          %p507 = scmp.lt.s32.totalorder %s506, 2
          %s508 = scalar_select %p507, %s506, 2
          %s509 = smul.u32 128, %s508
          %s511 = ssub.s32 256, %s509
          %512 = vsyncadd %s490, %s511
          %p513 = scmp.ne.s32.totalorder 0, %s509
          %s514 = smul.addr %s505, 128
          %s515 = scalar_lea.hbm %s4, %s514
          %s516 = smul.u32 %s508, 8
          %s517 = sshll.u32 %s516, 4
          %s518 = sshll.u32 %s493, 4
          %s519 = int_to_ptr.vmem [resolvable:$true] %s518
          %521 = dma.vmem_to_hbm [thread:$0]  (%p513), %s519, %s517, %s515, %s490
        $region40: #{accumulated_normalization.1} parent=35 // pred_fallthru
          _
        // Predicated region
        $region41: #{accumulated_normalization.1} parent=35 // pred_check
          %p522 = pneg %p165
        $region42: #{accumulated_normalization.1} parent=35 // pred_check_branch
          %524 = sbr.rel (%p522) target = $region44
        $region43: #{accumulated_normalization.1} parent=35 // pred_region
          %s525 = smul.u32 2, %s22
          %s526 = ssub.s32 3, %s525
          %p527 = scmp.lt.s32.totalorder %s526, 2
          %s528 = scalar_select %p527, %s526, 2
          %s529 = smul.u32 16, %s528
          %p530 = scmp.ne.s32.totalorder 0, %s529
          %s531 = scalar_lea.vmem %s5, %s525
          // Predicated region
          $region45: #{accumulated_normalization.1} parent=43 // pred_check
            %p532 = pneg %p530
          $region46: #{accumulated_normalization.1} parent=43 // pred_check_branch
            %534 = sbr.rel (%p532) target = $region48
          $region47: #{accumulated_normalization.1} parent=43 // pred_region
            %p535 = scmp.lt.u32.totalorder %s528, 8
            %p536 = pneg %p535
            // Predicated region
            $region49: #{accumulated_normalization.1} parent=47 // pred_check
              _
            $region50: #{accumulated_normalization.1} parent=47 // pred_check_branch
              %538 = sbr.rel (%p535) target = $region52
            $region51: #{accumulated_normalization.1} parent=47 // pred_region
              %s554 = sand.u32 %s528, 7
              %p555 = scmp.eq.s32.totalorder %s554, 0
              // Predicated region
              $region64: #{accumulated_normalization.1} parent=51 // pred_check
                %p556 = pneg %p555
              $region65: #{accumulated_normalization.1} parent=51 // pred_check_branch
                %558 = sbr.rel (%p556) target = $region67
              $region66: #{accumulated_normalization.1} parent=51 // pred_region
                %s559 = sshrl.u32 %s528, 3
                %s560 = sshrl.u32 %s559, 6
                // While loop
                $region68: #{accumulated_normalization.1} parent=66 // loop_pre_header
                  _
                $region69: #{accumulated_normalization.1} parent=66 // loop_header
                  %s564 = sphi 0, %s566
                  %p565 = scmp.ge.s32.totalorder %s564, %s560
                  %s569 = sphi 0, %s702
                  %s570 = sphi %s497, %s705
                  %s571 = sphi %s531, %s706
                $region70: #{accumulated_normalization.1} parent=66 // loop_header_branch
                  %568 = sbr.rel (%p565) target = $region74
                $region71: #{accumulated_normalization.1} parent=66 // loop_body
                  %v572 = vld [vmem:[%s570] sm:$0xff]
                  %573 = vst [vmem:[%s571] sm:$0xff] %v572
                  %v574 = vld [vmem:[%s570 + $0x8] sm:$0xff]
                  %575 = vst [vmem:[%s571 + $0x8] sm:$0xff] %v574
                  %v576 = vld [vmem:[%s570 + $0x10] sm:$0xff]
                  %577 = vst [vmem:[%s571 + $0x10] sm:$0xff] %v576
                  %v578 = vld [vmem:[%s570 + $0x18] sm:$0xff]
                  %579 = vst [vmem:[%s571 + $0x18] sm:$0xff] %v578
                  %v580 = vld [vmem:[%s570 + $0x20] sm:$0xff]
                  %581 = vst [vmem:[%s571 + $0x20] sm:$0xff] %v580
                  %v582 = vld [vmem:[%s570 + $0x28] sm:$0xff]
                  %583 = vst [vmem:[%s571 + $0x28] sm:$0xff] %v582
                  %v584 = vld [vmem:[%s570 + $0x30] sm:$0xff]
                  %585 = vst [vmem:[%s571 + $0x30] sm:$0xff] %v584
                  %v586 = vld [vmem:[%s570 + $0x38] sm:$0xff]
                  %587 = vst [vmem:[%s571 + $0x38] sm:$0xff] %v586
                  %v588 = vld [vmem:[%s570 + $0x40] sm:$0xff]
                  %589 = vst [vmem:[%s571 + $0x40] sm:$0xff] %v588
                  %v590 = vld [vmem:[%s570 + $0x48] sm:$0xff]
                  %591 = vst [vmem:[%s571 + $0x48] sm:$0xff] %v590
                  %v592 = vld [vmem:[%s570 + $0x50] sm:$0xff]
                  %593 = vst [vmem:[%s571 + $0x50] sm:$0xff] %v592
                  %v594 = vld [vmem:[%s570 + $0x58] sm:$0xff]
                  %595 = vst [vmem:[%s571 + $0x58] sm:$0xff] %v594
                  %v596 = vld [vmem:[%s570 + $0x60] sm:$0xff]
                  %597 = vst [vmem:[%s571 + $0x60] sm:$0xff] %v596
                  %v598 = vld [vmem:[%s570 + $0x68] sm:$0xff]
                  %599 = vst [vmem:[%s571 + $0x68] sm:$0xff] %v598
                  %v600 = vld [vmem:[%s570 + $0x70] sm:$0xff]
                  %601 = vst [vmem:[%s571 + $0x70] sm:$0xff] %v600
                  %v602 = vld [vmem:[%s570 + $0x78] sm:$0xff]
                  %603 = vst [vmem:[%s571 + $0x78] sm:$0xff] %v602
                  %v604 = vld [vmem:[%s570 + $0x80] sm:$0xff]
                  %605 = vst [vmem:[%s571 + $0x80] sm:$0xff] %v604
                  %v606 = vld [vmem:[%s570 + $0x88] sm:$0xff]
                  %607 = vst [vmem:[%s571 + $0x88] sm:$0xff] %v606
                  %v608 = vld [vmem:[%s570 + $0x90] sm:$0xff]
                  %609 = vst [vmem:[%s571 + $0x90] sm:$0xff] %v608
                  %v610 = vld [vmem:[%s570 + $0x98] sm:$0xff]
                  %611 = vst [vmem:[%s571 + $0x98] sm:$0xff] %v610
                  %v612 = vld [vmem:[%s570 + $0xa0] sm:$0xff]
                  %613 = vst [vmem:[%s571 + $0xa0] sm:$0xff] %v612
                  %v614 = vld [vmem:[%s570 + $0xa8] sm:$0xff]
                  %615 = vst [vmem:[%s571 + $0xa8] sm:$0xff] %v614
                  %v616 = vld [vmem:[%s570 + $0xb0] sm:$0xff]
                  %617 = vst [vmem:[%s571 + $0xb0] sm:$0xff] %v616
                  %v618 = vld [vmem:[%s570 + $0xb8] sm:$0xff]
                  %619 = vst [vmem:[%s571 + $0xb8] sm:$0xff] %v618
                  %v620 = vld [vmem:[%s570 + $0xc0] sm:$0xff]
                  %621 = vst [vmem:[%s571 + $0xc0] sm:$0xff] %v620
                  %v622 = vld [vmem:[%s570 + $0xc8] sm:$0xff]
                  %623 = vst [vmem:[%s571 + $0xc8] sm:$0xff] %v622
                  %v624 = vld [vmem:[%s570 + $0xd0] sm:$0xff]
                  %625 = vst [vmem:[%s571 + $0xd0] sm:$0xff] %v624
                  %v626 = vld [vmem:[%s570 + $0xd8] sm:$0xff]
                  %627 = vst [vmem:[%s571 + $0xd8] sm:$0xff] %v626
                  %v628 = vld [vmem:[%s570 + $0xe0] sm:$0xff]
                  %629 = vst [vmem:[%s571 + $0xe0] sm:$0xff] %v628
                  %v630 = vld [vmem:[%s570 + $0xe8] sm:$0xff]
                  %631 = vst [vmem:[%s571 + $0xe8] sm:$0xff] %v630
                  %v632 = vld [vmem:[%s570 + $0xf0] sm:$0xff]
                  %633 = vst [vmem:[%s571 + $0xf0] sm:$0xff] %v632
                  %v634 = vld [vmem:[%s570 + $0xf8] sm:$0xff]
                  %635 = vst [vmem:[%s571 + $0xf8] sm:$0xff] %v634
                  %v636 = vld [vmem:[%s570 + $0x100] sm:$0xff]
                  %637 = vst [vmem:[%s571 + $0x100] sm:$0xff] %v636
                  %v638 = vld [vmem:[%s570 + $0x108] sm:$0xff]
                  %639 = vst [vmem:[%s571 + $0x108] sm:$0xff] %v638
                  %v640 = vld [vmem:[%s570 + $0x110] sm:$0xff]
                  %641 = vst [vmem:[%s571 + $0x110] sm:$0xff] %v640
                  %v642 = vld [vmem:[%s570 + $0x118] sm:$0xff]
                  %643 = vst [vmem:[%s571 + $0x118] sm:$0xff] %v642
                  %v644 = vld [vmem:[%s570 + $0x120] sm:$0xff]
                  %645 = vst [vmem:[%s571 + $0x120] sm:$0xff] %v644
                  %v646 = vld [vmem:[%s570 + $0x128] sm:$0xff]
                  %647 = vst [vmem:[%s571 + $0x128] sm:$0xff] %v646
                  %v648 = vld [vmem:[%s570 + $0x130] sm:$0xff]
                  %649 = vst [vmem:[%s571 + $0x130] sm:$0xff] %v648
                  %v650 = vld [vmem:[%s570 + $0x138] sm:$0xff]
                  %651 = vst [vmem:[%s571 + $0x138] sm:$0xff] %v650
                  %v652 = vld [vmem:[%s570 + $0x140] sm:$0xff]
                  %653 = vst [vmem:[%s571 + $0x140] sm:$0xff] %v652
                  %v654 = vld [vmem:[%s570 + $0x148] sm:$0xff]
                  %655 = vst [vmem:[%s571 + $0x148] sm:$0xff] %v654
                  %v656 = vld [vmem:[%s570 + $0x150] sm:$0xff]
                  %657 = vst [vmem:[%s571 + $0x150] sm:$0xff] %v656
                  %v658 = vld [vmem:[%s570 + $0x158] sm:$0xff]
                  %659 = vst [vmem:[%s571 + $0x158] sm:$0xff] %v658
                  %v660 = vld [vmem:[%s570 + $0x160] sm:$0xff]
                  %661 = vst [vmem:[%s571 + $0x160] sm:$0xff] %v660
                  %v662 = vld [vmem:[%s570 + $0x168] sm:$0xff]
                  %663 = vst [vmem:[%s571 + $0x168] sm:$0xff] %v662
                  %v664 = vld [vmem:[%s570 + $0x170] sm:$0xff]
                  %665 = vst [vmem:[%s571 + $0x170] sm:$0xff] %v664
                  %v666 = vld [vmem:[%s570 + $0x178] sm:$0xff]
                  %667 = vst [vmem:[%s571 + $0x178] sm:$0xff] %v666
                  %v668 = vld [vmem:[%s570 + $0x180] sm:$0xff]
                  %669 = vst [vmem:[%s571 + $0x180] sm:$0xff] %v668
                  %v670 = vld [vmem:[%s570 + $0x188] sm:$0xff]
                  %671 = vst [vmem:[%s571 + $0x188] sm:$0xff] %v670
                  %v672 = vld [vmem:[%s570 + $0x190] sm:$0xff]
                  %673 = vst [vmem:[%s571 + $0x190] sm:$0xff] %v672
                  %v674 = vld [vmem:[%s570 + $0x198] sm:$0xff]
                  %675 = vst [vmem:[%s571 + $0x198] sm:$0xff] %v674
                  %v676 = vld [vmem:[%s570 + $0x1a0] sm:$0xff]
                  %677 = vst [vmem:[%s571 + $0x1a0] sm:$0xff] %v676
                  %v678 = vld [vmem:[%s570 + $0x1a8] sm:$0xff]
                  %679 = vst [vmem:[%s571 + $0x1a8] sm:$0xff] %v678
                  %v680 = vld [vmem:[%s570 + $0x1b0] sm:$0xff]
                  %681 = vst [vmem:[%s571 + $0x1b0] sm:$0xff] %v680
                  %v682 = vld [vmem:[%s570 + $0x1b8] sm:$0xff]
                  %683 = vst [vmem:[%s571 + $0x1b8] sm:$0xff] %v682
                  %v684 = vld [vmem:[%s570 + $0x1c0] sm:$0xff]
                  %685 = vst [vmem:[%s571 + $0x1c0] sm:$0xff] %v684
                  %v686 = vld [vmem:[%s570 + $0x1c8] sm:$0xff]
                  %687 = vst [vmem:[%s571 + $0x1c8] sm:$0xff] %v686
                  %v688 = vld [vmem:[%s570 + $0x1d0] sm:$0xff]
                  %689 = vst [vmem:[%s571 + $0x1d0] sm:$0xff] %v688
                  %v690 = vld [vmem:[%s570 + $0x1d8] sm:$0xff]
                  %691 = vst [vmem:[%s571 + $0x1d8] sm:$0xff] %v690
                  %v692 = vld [vmem:[%s570 + $0x1e0] sm:$0xff]
                  %693 = vst [vmem:[%s571 + $0x1e0] sm:$0xff] %v692
                  %v694 = vld [vmem:[%s570 + $0x1e8] sm:$0xff]
                  %695 = vst [vmem:[%s571 + $0x1e8] sm:$0xff] %v694
                  %v696 = vld [vmem:[%s570 + $0x1f0] sm:$0xff]
                  %697 = vst [vmem:[%s571 + $0x1f0] sm:$0xff] %v696
                  %v698 = vld [vmem:[%s570 + $0x1f8] sm:$0xff]
                  %699 = vst [vmem:[%s571 + $0x1f8] sm:$0xff] %v698
                  %s700 = sadd.s32 1, %s569
                  %p701 = scmp.ge.s32.totalorder %s700, %s560
                  %s702 = scalar_select %p701, 0, %s700
                  %s703 = smul.u32 %s702, 512
                  %s704 = smul.u32 %s702, 512
                  %s705 = scalar_lea.vmem %s497, %s703 [#allocation5]
                  %s706 = scalar_lea.vmem %s531, %s704
                $region72: #{accumulated_normalization.1} parent=66 // loop_footer
                  %s566 = sadd.s32 %s564, 1
                $region73: #{accumulated_normalization.1} parent=66 // loop_footer_branch
                  %563 = sbr.rel target = $region69
                $region74: #{accumulated_normalization.1} parent=66 // loop_exit
                  _
                %s707 = sshrl.u32 %s559, 6
                %s708 = sand.u32 %s559, 63
                %s709 = smul.u32 %s707, 64
                %s710 = smul.u32 128, %s709
                %s711 = sshra.s32 %s710, 4
                %s712 = scalar_lea.vmem %s497, %s711 [#allocation5]
                %s713 = smul.u32 128, %s709
                %s714 = sshra.s32 %s713, 4
                %s715 = scalar_lea.vmem %s531, %s714
                // While loop
                $region75: #{accumulated_normalization.1} parent=66 // loop_pre_header
                  _
                $region76: #{accumulated_normalization.1} parent=66 // loop_header
                  %s719 = sphi 0, %s721
                  %p720 = scmp.ge.s32.totalorder %s719, %s708
                  %s724 = sphi 0, %s731
                  %s725 = sphi %s712, %s734
                  %s726 = sphi %s715, %s735
                $region77: #{accumulated_normalization.1} parent=66 // loop_header_branch
                  %723 = sbr.rel (%p720) target = $region81
                $region78: #{accumulated_normalization.1} parent=66 // loop_body
                  %v727 = vld [vmem:[%s725] sm:$0xff]
                  %728 = vst [vmem:[%s726] sm:$0xff] %v727
                  %s729 = sadd.s32 1, %s724
                  %p730 = scmp.ge.s32.totalorder %s729, %s708
                  %s731 = scalar_select %p730, 0, %s729
                  %s732 = smul.u32 %s731, 8
                  %s733 = smul.u32 %s731, 8
                  %s734 = scalar_lea.vmem %s712, %s732 [#allocation5]
                  %s735 = scalar_lea.vmem %s715, %s733
                $region79: #{accumulated_normalization.1} parent=66 // loop_footer
                  %s721 = sadd.s32 %s719, 1
                $region80: #{accumulated_normalization.1} parent=66 // loop_footer_branch
                  %718 = sbr.rel target = $region76
                $region81: #{accumulated_normalization.1} parent=66 // loop_exit
                  _
              $region67: #{accumulated_normalization.1} parent=51 // pred_fallthru
                _
              %p736 = pneg %p555
              // Predicated region
              $region82: #{accumulated_normalization.1} parent=51 // pred_check
                _
              $region83: #{accumulated_normalization.1} parent=51 // pred_check_branch
                %738 = sbr.rel (%p555) target = $region85
              $region84: #{accumulated_normalization.1} parent=51 // pred_region
                %s739 = sand.u32 %s528, 7
                %s740 = ssub.s32 %s528, %s739
                %s741 = scalar_lea.vmem %s497, %s740 [#allocation5]
                %s742 = ssub.s32 %s528, %s739
                %s743 = scalar_lea.vmem %s531, %s742
                %s744 = sshrl.u32 %s528, 3
                %s745 = sshrl.u32 %s744, 6
                // While loop
                $region86: #{accumulated_normalization.1} parent=84 // loop_pre_header
                  _
                $region87: #{accumulated_normalization.1} parent=84 // loop_header
                  %s749 = sphi 0, %s751
                  %p750 = scmp.ge.s32.totalorder %s749, %s745
                  %s754 = sphi 0, %s887
                  %s755 = sphi %s497, %s890
                  %s756 = sphi %s531, %s891
                $region88: #{accumulated_normalization.1} parent=84 // loop_header_branch
                  %753 = sbr.rel (%p750) target = $region92
                $region89: #{accumulated_normalization.1} parent=84 // loop_body
                  %v757 = vld [vmem:[%s755] sm:$0xff]
                  %758 = vst [vmem:[%s756] sm:$0xff] %v757
                  %v759 = vld [vmem:[%s755 + $0x8] sm:$0xff]
                  %760 = vst [vmem:[%s756 + $0x8] sm:$0xff] %v759
                  %v761 = vld [vmem:[%s755 + $0x10] sm:$0xff]
                  %762 = vst [vmem:[%s756 + $0x10] sm:$0xff] %v761
                  %v763 = vld [vmem:[%s755 + $0x18] sm:$0xff]
                  %764 = vst [vmem:[%s756 + $0x18] sm:$0xff] %v763
                  %v765 = vld [vmem:[%s755 + $0x20] sm:$0xff]
                  %766 = vst [vmem:[%s756 + $0x20] sm:$0xff] %v765
                  %v767 = vld [vmem:[%s755 + $0x28] sm:$0xff]
                  %768 = vst [vmem:[%s756 + $0x28] sm:$0xff] %v767
                  %v769 = vld [vmem:[%s755 + $0x30] sm:$0xff]
                  %770 = vst [vmem:[%s756 + $0x30] sm:$0xff] %v769
                  %v771 = vld [vmem:[%s755 + $0x38] sm:$0xff]
                  %772 = vst [vmem:[%s756 + $0x38] sm:$0xff] %v771
                  %v773 = vld [vmem:[%s755 + $0x40] sm:$0xff]
                  %774 = vst [vmem:[%s756 + $0x40] sm:$0xff] %v773
                  %v775 = vld [vmem:[%s755 + $0x48] sm:$0xff]
                  %776 = vst [vmem:[%s756 + $0x48] sm:$0xff] %v775
                  %v777 = vld [vmem:[%s755 + $0x50] sm:$0xff]
                  %778 = vst [vmem:[%s756 + $0x50] sm:$0xff] %v777
                  %v779 = vld [vmem:[%s755 + $0x58] sm:$0xff]
                  %780 = vst [vmem:[%s756 + $0x58] sm:$0xff] %v779
                  %v781 = vld [vmem:[%s755 + $0x60] sm:$0xff]
                  %782 = vst [vmem:[%s756 + $0x60] sm:$0xff] %v781
                  %v783 = vld [vmem:[%s755 + $0x68] sm:$0xff]
                  %784 = vst [vmem:[%s756 + $0x68] sm:$0xff] %v783
                  %v785 = vld [vmem:[%s755 + $0x70] sm:$0xff]
                  %786 = vst [vmem:[%s756 + $0x70] sm:$0xff] %v785
                  %v787 = vld [vmem:[%s755 + $0x78] sm:$0xff]
                  %788 = vst [vmem:[%s756 + $0x78] sm:$0xff] %v787
                  %v789 = vld [vmem:[%s755 + $0x80] sm:$0xff]
                  %790 = vst [vmem:[%s756 + $0x80] sm:$0xff] %v789
                  %v791 = vld [vmem:[%s755 + $0x88] sm:$0xff]
                  %792 = vst [vmem:[%s756 + $0x88] sm:$0xff] %v791
                  %v793 = vld [vmem:[%s755 + $0x90] sm:$0xff]
                  %794 = vst [vmem:[%s756 + $0x90] sm:$0xff] %v793
                  %v795 = vld [vmem:[%s755 + $0x98] sm:$0xff]
                  %796 = vst [vmem:[%s756 + $0x98] sm:$0xff] %v795
                  %v797 = vld [vmem:[%s755 + $0xa0] sm:$0xff]
                  %798 = vst [vmem:[%s756 + $0xa0] sm:$0xff] %v797
                  %v799 = vld [vmem:[%s755 + $0xa8] sm:$0xff]
                  %800 = vst [vmem:[%s756 + $0xa8] sm:$0xff] %v799
                  %v801 = vld [vmem:[%s755 + $0xb0] sm:$0xff]
                  %802 = vst [vmem:[%s756 + $0xb0] sm:$0xff] %v801
                  %v803 = vld [vmem:[%s755 + $0xb8] sm:$0xff]
                  %804 = vst [vmem:[%s756 + $0xb8] sm:$0xff] %v803
                  %v805 = vld [vmem:[%s755 + $0xc0] sm:$0xff]
                  %806 = vst [vmem:[%s756 + $0xc0] sm:$0xff] %v805
                  %v807 = vld [vmem:[%s755 + $0xc8] sm:$0xff]
                  %808 = vst [vmem:[%s756 + $0xc8] sm:$0xff] %v807
                  %v809 = vld [vmem:[%s755 + $0xd0] sm:$0xff]
                  %810 = vst [vmem:[%s756 + $0xd0] sm:$0xff] %v809
                  %v811 = vld [vmem:[%s755 + $0xd8] sm:$0xff]
                  %812 = vst [vmem:[%s756 + $0xd8] sm:$0xff] %v811
                  %v813 = vld [vmem:[%s755 + $0xe0] sm:$0xff]
                  %814 = vst [vmem:[%s756 + $0xe0] sm:$0xff] %v813
                  %v815 = vld [vmem:[%s755 + $0xe8] sm:$0xff]
                  %816 = vst [vmem:[%s756 + $0xe8] sm:$0xff] %v815
                  %v817 = vld [vmem:[%s755 + $0xf0] sm:$0xff]
                  %818 = vst [vmem:[%s756 + $0xf0] sm:$0xff] %v817
                  %v819 = vld [vmem:[%s755 + $0xf8] sm:$0xff]
                  %820 = vst [vmem:[%s756 + $0xf8] sm:$0xff] %v819
                  %v821 = vld [vmem:[%s755 + $0x100] sm:$0xff]
                  %822 = vst [vmem:[%s756 + $0x100] sm:$0xff] %v821
                  %v823 = vld [vmem:[%s755 + $0x108] sm:$0xff]
                  %824 = vst [vmem:[%s756 + $0x108] sm:$0xff] %v823
                  %v825 = vld [vmem:[%s755 + $0x110] sm:$0xff]
                  %826 = vst [vmem:[%s756 + $0x110] sm:$0xff] %v825
                  %v827 = vld [vmem:[%s755 + $0x118] sm:$0xff]
                  %828 = vst [vmem:[%s756 + $0x118] sm:$0xff] %v827
                  %v829 = vld [vmem:[%s755 + $0x120] sm:$0xff]
                  %830 = vst [vmem:[%s756 + $0x120] sm:$0xff] %v829
                  %v831 = vld [vmem:[%s755 + $0x128] sm:$0xff]
                  %832 = vst [vmem:[%s756 + $0x128] sm:$0xff] %v831
                  %v833 = vld [vmem:[%s755 + $0x130] sm:$0xff]
                  %834 = vst [vmem:[%s756 + $0x130] sm:$0xff] %v833
                  %v835 = vld [vmem:[%s755 + $0x138] sm:$0xff]
                  %836 = vst [vmem:[%s756 + $0x138] sm:$0xff] %v835
                  %v837 = vld [vmem:[%s755 + $0x140] sm:$0xff]
                  %838 = vst [vmem:[%s756 + $0x140] sm:$0xff] %v837
                  %v839 = vld [vmem:[%s755 + $0x148] sm:$0xff]
                  %840 = vst [vmem:[%s756 + $0x148] sm:$0xff] %v839
                  %v841 = vld [vmem:[%s755 + $0x150] sm:$0xff]
                  %842 = vst [vmem:[%s756 + $0x150] sm:$0xff] %v841
                  %v843 = vld [vmem:[%s755 + $0x158] sm:$0xff]
                  %844 = vst [vmem:[%s756 + $0x158] sm:$0xff] %v843
                  %v845 = vld [vmem:[%s755 + $0x160] sm:$0xff]
                  %846 = vst [vmem:[%s756 + $0x160] sm:$0xff] %v845
                  %v847 = vld [vmem:[%s755 + $0x168] sm:$0xff]
                  %848 = vst [vmem:[%s756 + $0x168] sm:$0xff] %v847
                  %v849 = vld [vmem:[%s755 + $0x170] sm:$0xff]
                  %850 = vst [vmem:[%s756 + $0x170] sm:$0xff] %v849
                  %v851 = vld [vmem:[%s755 + $0x178] sm:$0xff]
                  %852 = vst [vmem:[%s756 + $0x178] sm:$0xff] %v851
                  %v853 = vld [vmem:[%s755 + $0x180] sm:$0xff]
                  %854 = vst [vmem:[%s756 + $0x180] sm:$0xff] %v853
                  %v855 = vld [vmem:[%s755 + $0x188] sm:$0xff]
                  %856 = vst [vmem:[%s756 + $0x188] sm:$0xff] %v855
                  %v857 = vld [vmem:[%s755 + $0x190] sm:$0xff]
                  %858 = vst [vmem:[%s756 + $0x190] sm:$0xff] %v857
                  %v859 = vld [vmem:[%s755 + $0x198] sm:$0xff]
                  %860 = vst [vmem:[%s756 + $0x198] sm:$0xff] %v859
                  %v861 = vld [vmem:[%s755 + $0x1a0] sm:$0xff]
                  %862 = vst [vmem:[%s756 + $0x1a0] sm:$0xff] %v861
                  %v863 = vld [vmem:[%s755 + $0x1a8] sm:$0xff]
                  %864 = vst [vmem:[%s756 + $0x1a8] sm:$0xff] %v863
                  %v865 = vld [vmem:[%s755 + $0x1b0] sm:$0xff]
                  %866 = vst [vmem:[%s756 + $0x1b0] sm:$0xff] %v865
                  %v867 = vld [vmem:[%s755 + $0x1b8] sm:$0xff]
                  %868 = vst [vmem:[%s756 + $0x1b8] sm:$0xff] %v867
                  %v869 = vld [vmem:[%s755 + $0x1c0] sm:$0xff]
                  %870 = vst [vmem:[%s756 + $0x1c0] sm:$0xff] %v869
                  %v871 = vld [vmem:[%s755 + $0x1c8] sm:$0xff]
                  %872 = vst [vmem:[%s756 + $0x1c8] sm:$0xff] %v871
                  %v873 = vld [vmem:[%s755 + $0x1d0] sm:$0xff]
                  %874 = vst [vmem:[%s756 + $0x1d0] sm:$0xff] %v873
                  %v875 = vld [vmem:[%s755 + $0x1d8] sm:$0xff]
                  %876 = vst [vmem:[%s756 + $0x1d8] sm:$0xff] %v875
                  %v877 = vld [vmem:[%s755 + $0x1e0] sm:$0xff]
                  %878 = vst [vmem:[%s756 + $0x1e0] sm:$0xff] %v877
                  %v879 = vld [vmem:[%s755 + $0x1e8] sm:$0xff]
                  %880 = vst [vmem:[%s756 + $0x1e8] sm:$0xff] %v879
                  %v881 = vld [vmem:[%s755 + $0x1f0] sm:$0xff]
                  %882 = vst [vmem:[%s756 + $0x1f0] sm:$0xff] %v881
                  %v883 = vld [vmem:[%s755 + $0x1f8] sm:$0xff]
                  %884 = vst [vmem:[%s756 + $0x1f8] sm:$0xff] %v883
                  %s885 = sadd.s32 1, %s754
                  %p886 = scmp.ge.s32.totalorder %s885, %s745
                  %s887 = scalar_select %p886, 0, %s885
                  %s888 = smul.u32 %s887, 512
                  %s889 = smul.u32 %s887, 512
                  %s890 = scalar_lea.vmem %s497, %s888 [#allocation5]
                  %s891 = scalar_lea.vmem %s531, %s889
                $region90: #{accumulated_normalization.1} parent=84 // loop_footer
                  %s751 = sadd.s32 %s749, 1
                $region91: #{accumulated_normalization.1} parent=84 // loop_footer_branch
                  %748 = sbr.rel target = $region87
                $region92: #{accumulated_normalization.1} parent=84 // loop_exit
                  _
                %s892 = sshrl.u32 %s744, 6
                %s893 = sand.u32 %s744, 63
                %s894 = smul.u32 %s892, 64
                %s895 = smul.u32 128, %s894
                %s896 = sshra.s32 %s895, 4
                %s897 = scalar_lea.vmem %s497, %s896 [#allocation5]
                %s898 = smul.u32 128, %s894
                %s899 = sshra.s32 %s898, 4
                %s900 = scalar_lea.vmem %s531, %s899
                // While loop
                $region93: #{accumulated_normalization.1} parent=84 // loop_pre_header
                  _
                $region94: #{accumulated_normalization.1} parent=84 // loop_header
                  %s904 = sphi 0, %s906
                  %p905 = scmp.ge.s32.totalorder %s904, %s893
                  %s909 = sphi 0, %s916
                  %s910 = sphi %s897, %s919
                  %s911 = sphi %s900, %s920
                $region95: #{accumulated_normalization.1} parent=84 // loop_header_branch
                  %908 = sbr.rel (%p905) target = $region99
                $region96: #{accumulated_normalization.1} parent=84 // loop_body
                  %v912 = vld [vmem:[%s910] sm:$0xff]
                  %913 = vst [vmem:[%s911] sm:$0xff] %v912
                  %s914 = sadd.s32 1, %s909
                  %p915 = scmp.ge.s32.totalorder %s914, %s893
                  %s916 = scalar_select %p915, 0, %s914
                  %s917 = smul.u32 %s916, 8
                  %s918 = smul.u32 %s916, 8
                  %s919 = scalar_lea.vmem %s897, %s917 [#allocation5]
                  %s920 = scalar_lea.vmem %s900, %s918
                $region97: #{accumulated_normalization.1} parent=84 // loop_footer
                  %s906 = sadd.s32 %s904, 1
                $region98: #{accumulated_normalization.1} parent=84 // loop_footer_branch
                  %903 = sbr.rel target = $region94
                $region99: #{accumulated_normalization.1} parent=84 // loop_exit
                  _
                %s921 = sshll.u32 1, %s739
                %s922 = ssub.s32 %s921, 1
                loop: start=0, step=1, limit=1
                $region100: #{accumulated_normalization.1} parent=84 // loop_pre_header
                  _
                $region101: #{accumulated_normalization.1} parent=84 // loop_header
                  %s924 = sphi 0, %s928
                  %p925 = scmp.ge.s32.totalorder %s924, 1
                  %s929 = sphi %s741, %s741
                  %s930 = sphi %s743, %s743
                $region102: #{accumulated_normalization.1} parent=84 // loop_header_branch
                  %927 = sbr.rel (%p925) target = $region106
                $region103: #{accumulated_normalization.1} parent=84 // loop_body
                  %v931 = vld [vmem:[%s929] sm:%s922]
                  %932 = vst [vmem:[%s930] sm:%s922] %v931
                $region104: #{accumulated_normalization.1} parent=84 // loop_footer
                  %s928 = sadd.s32 1, %s924
                $region105: #{accumulated_normalization.1} parent=84 // loop_footer_branch
                  %923 = sbr.rel target = $region101
                $region106: #{accumulated_normalization.1} parent=84 // loop_exit
                  _
              $region85: #{accumulated_normalization.1} parent=51 // pred_fallthru
                _
            $region52: #{accumulated_normalization.1} parent=47 // pred_fallthru
              _
            // Predicated region
            $region53: #{accumulated_normalization.1} parent=47 // pred_check
              %p539 = pneg %p535
            $region54: #{accumulated_normalization.1} parent=47 // pred_check_branch
              %541 = sbr.rel (%p539) target = $region56
            $region55: #{accumulated_normalization.1} parent=47 // pred_region
              %s542 = sshll.u32 1, %s528
              %s543 = ssub.s32 %s542, 1
              loop: start=0, step=1, limit=1
              $region57: #{accumulated_normalization.1} parent=55 // loop_pre_header
                _
              $region58: #{accumulated_normalization.1} parent=55 // loop_header
                %s545 = sphi 0, %s549
                %p546 = scmp.ge.s32.totalorder %s545, 1
                %s550 = sphi %s497, %s497
                %s551 = sphi %s531, %s531
              $region59: #{accumulated_normalization.1} parent=55 // loop_header_branch
                %548 = sbr.rel (%p546) target = $region63
              $region60: #{accumulated_normalization.1} parent=55 // loop_body
                %v552 = vld [vmem:[%s550] sm:%s543]
                %553 = vst [vmem:[%s551] sm:%s543] %v552
              $region61: #{accumulated_normalization.1} parent=55 // loop_footer
                %s549 = sadd.s32 1, %s545
              $region62: #{accumulated_normalization.1} parent=55 // loop_footer_branch
                %544 = sbr.rel target = $region58
              $region63: #{accumulated_normalization.1} parent=55 // loop_exit
                _
            $region56: #{accumulated_normalization.1} parent=47 // pred_fallthru
              _
          $region48: #{accumulated_normalization.1} parent=43 // pred_fallthru
            _
          %933 = vnop
        $region44: #{accumulated_normalization.1} parent=35 // pred_fallthru
          _
        // Predicated region
        $region107: #{accumulated_normalization.1} parent=35 // pred_check
          %p934 = pneg %p191
        $region108: #{accumulated_normalization.1} parent=35 // pred_check_branch
          %936 = sbr.rel (%p934) target = $region110
        $region109: #{accumulated_normalization.1} parent=35 // pred_region
          %s937 = smul.u32 2, %s22
          %s938 = ssub.s32 3, %s937
          %p939 = scmp.lt.s32.totalorder %s938, 2
          %s940 = scalar_select %p939, %s938, 2
          %s941 = smul.u32 16, %s940
          %p942 = scmp.ne.s32.totalorder 0, %s941
          %s943 = scalar_lea.vmem %s6, %s937
          // Predicated region
          $region111: #{accumulated_normalization.1} parent=109 // pred_check
            %p944 = pneg %p942
          $region112: #{accumulated_normalization.1} parent=109 // pred_check_branch
            %946 = sbr.rel (%p944) target = $region114
          $region113: #{accumulated_normalization.1} parent=109 // pred_region
            %p947 = scmp.lt.u32.totalorder %s940, 8
            %p948 = pneg %p947
            // Predicated region
            $region115: #{accumulated_normalization.1} parent=113 // pred_check
              _
            $region116: #{accumulated_normalization.1} parent=113 // pred_check_branch
              %950 = sbr.rel (%p947) target = $region118
            $region117: #{accumulated_normalization.1} parent=113 // pred_region
              %s966 = sand.u32 %s940, 7
              %p967 = scmp.eq.s32.totalorder %s966, 0
              // Predicated region
              $region130: #{accumulated_normalization.1} parent=117 // pred_check
                %p968 = pneg %p967
              $region131: #{accumulated_normalization.1} parent=117 // pred_check_branch
                %970 = sbr.rel (%p968) target = $region133
              $region132: #{accumulated_normalization.1} parent=117 // pred_region
                %s971 = sshrl.u32 %s940, 3
                %s972 = sshrl.u32 %s971, 6
                // While loop
                $region134: #{accumulated_normalization.1} parent=132 // loop_pre_header
                  _
                $region135: #{accumulated_normalization.1} parent=132 // loop_header
                  %s976 = sphi 0, %s978
                  %p977 = scmp.ge.s32.totalorder %s976, %s972
                  %s981 = sphi 0, %s1114
                  %s982 = sphi %s501, %s1117
                  %s983 = sphi %s943, %s1118
                $region136: #{accumulated_normalization.1} parent=132 // loop_header_branch
                  %980 = sbr.rel (%p977) target = $region140
                $region137: #{accumulated_normalization.1} parent=132 // loop_body
                  %v984 = vld [vmem:[%s982] sm:$0xff]
                  %985 = vst [vmem:[%s983] sm:$0xff] %v984
                  %v986 = vld [vmem:[%s982 + $0x8] sm:$0xff]
                  %987 = vst [vmem:[%s983 + $0x8] sm:$0xff] %v986
                  %v988 = vld [vmem:[%s982 + $0x10] sm:$0xff]
                  %989 = vst [vmem:[%s983 + $0x10] sm:$0xff] %v988
                  %v990 = vld [vmem:[%s982 + $0x18] sm:$0xff]
                  %991 = vst [vmem:[%s983 + $0x18] sm:$0xff] %v990
                  %v992 = vld [vmem:[%s982 + $0x20] sm:$0xff]
                  %993 = vst [vmem:[%s983 + $0x20] sm:$0xff] %v992
                  %v994 = vld [vmem:[%s982 + $0x28] sm:$0xff]
                  %995 = vst [vmem:[%s983 + $0x28] sm:$0xff] %v994
                  %v996 = vld [vmem:[%s982 + $0x30] sm:$0xff]
                  %997 = vst [vmem:[%s983 + $0x30] sm:$0xff] %v996
                  %v998 = vld [vmem:[%s982 + $0x38] sm:$0xff]
                  %999 = vst [vmem:[%s983 + $0x38] sm:$0xff] %v998
                  %v1000 = vld [vmem:[%s982 + $0x40] sm:$0xff]
                  %1001 = vst [vmem:[%s983 + $0x40] sm:$0xff] %v1000
                  %v1002 = vld [vmem:[%s982 + $0x48] sm:$0xff]
                  %1003 = vst [vmem:[%s983 + $0x48] sm:$0xff] %v1002
                  %v1004 = vld [vmem:[%s982 + $0x50] sm:$0xff]
                  %1005 = vst [vmem:[%s983 + $0x50] sm:$0xff] %v1004
                  %v1006 = vld [vmem:[%s982 + $0x58] sm:$0xff]
                  %1007 = vst [vmem:[%s983 + $0x58] sm:$0xff] %v1006
                  %v1008 = vld [vmem:[%s982 + $0x60] sm:$0xff]
                  %1009 = vst [vmem:[%s983 + $0x60] sm:$0xff] %v1008
                  %v1010 = vld [vmem:[%s982 + $0x68] sm:$0xff]
                  %1011 = vst [vmem:[%s983 + $0x68] sm:$0xff] %v1010
                  %v1012 = vld [vmem:[%s982 + $0x70] sm:$0xff]
                  %1013 = vst [vmem:[%s983 + $0x70] sm:$0xff] %v1012
                  %v1014 = vld [vmem:[%s982 + $0x78] sm:$0xff]
                  %1015 = vst [vmem:[%s983 + $0x78] sm:$0xff] %v1014
                  %v1016 = vld [vmem:[%s982 + $0x80] sm:$0xff]
                  %1017 = vst [vmem:[%s983 + $0x80] sm:$0xff] %v1016
                  %v1018 = vld [vmem:[%s982 + $0x88] sm:$0xff]
                  %1019 = vst [vmem:[%s983 + $0x88] sm:$0xff] %v1018
                  %v1020 = vld [vmem:[%s982 + $0x90] sm:$0xff]
                  %1021 = vst [vmem:[%s983 + $0x90] sm:$0xff] %v1020
                  %v1022 = vld [vmem:[%s982 + $0x98] sm:$0xff]
                  %1023 = vst [vmem:[%s983 + $0x98] sm:$0xff] %v1022
                  %v1024 = vld [vmem:[%s982 + $0xa0] sm:$0xff]
                  %1025 = vst [vmem:[%s983 + $0xa0] sm:$0xff] %v1024
                  %v1026 = vld [vmem:[%s982 + $0xa8] sm:$0xff]
                  %1027 = vst [vmem:[%s983 + $0xa8] sm:$0xff] %v1026
                  %v1028 = vld [vmem:[%s982 + $0xb0] sm:$0xff]
                  %1029 = vst [vmem:[%s983 + $0xb0] sm:$0xff] %v1028
                  %v1030 = vld [vmem:[%s982 + $0xb8] sm:$0xff]
                  %1031 = vst [vmem:[%s983 + $0xb8] sm:$0xff] %v1030
                  %v1032 = vld [vmem:[%s982 + $0xc0] sm:$0xff]
                  %1033 = vst [vmem:[%s983 + $0xc0] sm:$0xff] %v1032
                  %v1034 = vld [vmem:[%s982 + $0xc8] sm:$0xff]
                  %1035 = vst [vmem:[%s983 + $0xc8] sm:$0xff] %v1034
                  %v1036 = vld [vmem:[%s982 + $0xd0] sm:$0xff]
                  %1037 = vst [vmem:[%s983 + $0xd0] sm:$0xff] %v1036
                  %v1038 = vld [vmem:[%s982 + $0xd8] sm:$0xff]
                  %1039 = vst [vmem:[%s983 + $0xd8] sm:$0xff] %v1038
                  %v1040 = vld [vmem:[%s982 + $0xe0] sm:$0xff]
                  %1041 = vst [vmem:[%s983 + $0xe0] sm:$0xff] %v1040
                  %v1042 = vld [vmem:[%s982 + $0xe8] sm:$0xff]
                  %1043 = vst [vmem:[%s983 + $0xe8] sm:$0xff] %v1042
                  %v1044 = vld [vmem:[%s982 + $0xf0] sm:$0xff]
                  %1045 = vst [vmem:[%s983 + $0xf0] sm:$0xff] %v1044
                  %v1046 = vld [vmem:[%s982 + $0xf8] sm:$0xff]
                  %1047 = vst [vmem:[%s983 + $0xf8] sm:$0xff] %v1046
                  %v1048 = vld [vmem:[%s982 + $0x100] sm:$0xff]
                  %1049 = vst [vmem:[%s983 + $0x100] sm:$0xff] %v1048
                  %v1050 = vld [vmem:[%s982 + $0x108] sm:$0xff]
                  %1051 = vst [vmem:[%s983 + $0x108] sm:$0xff] %v1050
                  %v1052 = vld [vmem:[%s982 + $0x110] sm:$0xff]
                  %1053 = vst [vmem:[%s983 + $0x110] sm:$0xff] %v1052
                  %v1054 = vld [vmem:[%s982 + $0x118] sm:$0xff]
                  %1055 = vst [vmem:[%s983 + $0x118] sm:$0xff] %v1054
                  %v1056 = vld [vmem:[%s982 + $0x120] sm:$0xff]
                  %1057 = vst [vmem:[%s983 + $0x120] sm:$0xff] %v1056
                  %v1058 = vld [vmem:[%s982 + $0x128] sm:$0xff]
                  %1059 = vst [vmem:[%s983 + $0x128] sm:$0xff] %v1058
                  %v1060 = vld [vmem:[%s982 + $0x130] sm:$0xff]
                  %1061 = vst [vmem:[%s983 + $0x130] sm:$0xff] %v1060
                  %v1062 = vld [vmem:[%s982 + $0x138] sm:$0xff]
                  %1063 = vst [vmem:[%s983 + $0x138] sm:$0xff] %v1062
                  %v1064 = vld [vmem:[%s982 + $0x140] sm:$0xff]
                  %1065 = vst [vmem:[%s983 + $0x140] sm:$0xff] %v1064
                  %v1066 = vld [vmem:[%s982 + $0x148] sm:$0xff]
                  %1067 = vst [vmem:[%s983 + $0x148] sm:$0xff] %v1066
                  %v1068 = vld [vmem:[%s982 + $0x150] sm:$0xff]
                  %1069 = vst [vmem:[%s983 + $0x150] sm:$0xff] %v1068
                  %v1070 = vld [vmem:[%s982 + $0x158] sm:$0xff]
                  %1071 = vst [vmem:[%s983 + $0x158] sm:$0xff] %v1070
                  %v1072 = vld [vmem:[%s982 + $0x160] sm:$0xff]
                  %1073 = vst [vmem:[%s983 + $0x160] sm:$0xff] %v1072
                  %v1074 = vld [vmem:[%s982 + $0x168] sm:$0xff]
                  %1075 = vst [vmem:[%s983 + $0x168] sm:$0xff] %v1074
                  %v1076 = vld [vmem:[%s982 + $0x170] sm:$0xff]
                  %1077 = vst [vmem:[%s983 + $0x170] sm:$0xff] %v1076
                  %v1078 = vld [vmem:[%s982 + $0x178] sm:$0xff]
                  %1079 = vst [vmem:[%s983 + $0x178] sm:$0xff] %v1078
                  %v1080 = vld [vmem:[%s982 + $0x180] sm:$0xff]
                  %1081 = vst [vmem:[%s983 + $0x180] sm:$0xff] %v1080
                  %v1082 = vld [vmem:[%s982 + $0x188] sm:$0xff]
                  %1083 = vst [vmem:[%s983 + $0x188] sm:$0xff] %v1082
                  %v1084 = vld [vmem:[%s982 + $0x190] sm:$0xff]
                  %1085 = vst [vmem:[%s983 + $0x190] sm:$0xff] %v1084
                  %v1086 = vld [vmem:[%s982 + $0x198] sm:$0xff]
                  %1087 = vst [vmem:[%s983 + $0x198] sm:$0xff] %v1086
                  %v1088 = vld [vmem:[%s982 + $0x1a0] sm:$0xff]
                  %1089 = vst [vmem:[%s983 + $0x1a0] sm:$0xff] %v1088
                  %v1090 = vld [vmem:[%s982 + $0x1a8] sm:$0xff]
                  %1091 = vst [vmem:[%s983 + $0x1a8] sm:$0xff] %v1090
                  %v1092 = vld [vmem:[%s982 + $0x1b0] sm:$0xff]
                  %1093 = vst [vmem:[%s983 + $0x1b0] sm:$0xff] %v1092
                  %v1094 = vld [vmem:[%s982 + $0x1b8] sm:$0xff]
                  %1095 = vst [vmem:[%s983 + $0x1b8] sm:$0xff] %v1094
                  %v1096 = vld [vmem:[%s982 + $0x1c0] sm:$0xff]
                  %1097 = vst [vmem:[%s983 + $0x1c0] sm:$0xff] %v1096
                  %v1098 = vld [vmem:[%s982 + $0x1c8] sm:$0xff]
                  %1099 = vst [vmem:[%s983 + $0x1c8] sm:$0xff] %v1098
                  %v1100 = vld [vmem:[%s982 + $0x1d0] sm:$0xff]
                  %1101 = vst [vmem:[%s983 + $0x1d0] sm:$0xff] %v1100
                  %v1102 = vld [vmem:[%s982 + $0x1d8] sm:$0xff]
                  %1103 = vst [vmem:[%s983 + $0x1d8] sm:$0xff] %v1102
                  %v1104 = vld [vmem:[%s982 + $0x1e0] sm:$0xff]
                  %1105 = vst [vmem:[%s983 + $0x1e0] sm:$0xff] %v1104
                  %v1106 = vld [vmem:[%s982 + $0x1e8] sm:$0xff]
                  %1107 = vst [vmem:[%s983 + $0x1e8] sm:$0xff] %v1106
                  %v1108 = vld [vmem:[%s982 + $0x1f0] sm:$0xff]
                  %1109 = vst [vmem:[%s983 + $0x1f0] sm:$0xff] %v1108
                  %v1110 = vld [vmem:[%s982 + $0x1f8] sm:$0xff]
                  %1111 = vst [vmem:[%s983 + $0x1f8] sm:$0xff] %v1110
                  %s1112 = sadd.s32 1, %s981
                  %p1113 = scmp.ge.s32.totalorder %s1112, %s972
                  %s1114 = scalar_select %p1113, 0, %s1112
                  %s1115 = smul.u32 %s1114, 512
                  %s1116 = smul.u32 %s1114, 512
                  %s1117 = scalar_lea.vmem %s501, %s1115 [#allocation6]
                  %s1118 = scalar_lea.vmem %s943, %s1116
                $region138: #{accumulated_normalization.1} parent=132 // loop_footer
                  %s978 = sadd.s32 %s976, 1
                $region139: #{accumulated_normalization.1} parent=132 // loop_footer_branch
                  %975 = sbr.rel target = $region135
                $region140: #{accumulated_normalization.1} parent=132 // loop_exit
                  _
                %s1119 = sshrl.u32 %s971, 6
                %s1120 = sand.u32 %s971, 63
                %s1121 = smul.u32 %s1119, 64
                %s1122 = smul.u32 128, %s1121
                %s1123 = sshra.s32 %s1122, 4
                %s1124 = scalar_lea.vmem %s501, %s1123 [#allocation6]
                %s1125 = smul.u32 128, %s1121
                %s1126 = sshra.s32 %s1125, 4
                %s1127 = scalar_lea.vmem %s943, %s1126
                // While loop
                $region141: #{accumulated_normalization.1} parent=132 // loop_pre_header
                  _
                $region142: #{accumulated_normalization.1} parent=132 // loop_header
                  %s1131 = sphi 0, %s1133
                  %p1132 = scmp.ge.s32.totalorder %s1131, %s1120
                  %s1136 = sphi 0, %s1143
                  %s1137 = sphi %s1124, %s1146
                  %s1138 = sphi %s1127, %s1147
                $region143: #{accumulated_normalization.1} parent=132 // loop_header_branch
                  %1135 = sbr.rel (%p1132) target = $region147
                $region144: #{accumulated_normalization.1} parent=132 // loop_body
                  %v1139 = vld [vmem:[%s1137] sm:$0xff]
                  %1140 = vst [vmem:[%s1138] sm:$0xff] %v1139
                  %s1141 = sadd.s32 1, %s1136
                  %p1142 = scmp.ge.s32.totalorder %s1141, %s1120
                  %s1143 = scalar_select %p1142, 0, %s1141
                  %s1144 = smul.u32 %s1143, 8
                  %s1145 = smul.u32 %s1143, 8
                  %s1146 = scalar_lea.vmem %s1124, %s1144 [#allocation6]
                  %s1147 = scalar_lea.vmem %s1127, %s1145
                $region145: #{accumulated_normalization.1} parent=132 // loop_footer
                  %s1133 = sadd.s32 %s1131, 1
                $region146: #{accumulated_normalization.1} parent=132 // loop_footer_branch
                  %1130 = sbr.rel target = $region142
                $region147: #{accumulated_normalization.1} parent=132 // loop_exit
                  _
              $region133: #{accumulated_normalization.1} parent=117 // pred_fallthru
                _
              %p1148 = pneg %p967
              // Predicated region
              $region148: #{accumulated_normalization.1} parent=117 // pred_check
                _
              $region149: #{accumulated_normalization.1} parent=117 // pred_check_branch
                %1150 = sbr.rel (%p967) target = $region151
              $region150: #{accumulated_normalization.1} parent=117 // pred_region
                %s1151 = sand.u32 %s940, 7
                %s1152 = ssub.s32 %s940, %s1151
                %s1153 = scalar_lea.vmem %s501, %s1152 [#allocation6]
                %s1154 = ssub.s32 %s940, %s1151
                %s1155 = scalar_lea.vmem %s943, %s1154
                %s1156 = sshrl.u32 %s940, 3
                %s1157 = sshrl.u32 %s1156, 6
                // While loop
                $region152: #{accumulated_normalization.1} parent=150 // loop_pre_header
                  _
                $region153: #{accumulated_normalization.1} parent=150 // loop_header
                  %s1161 = sphi 0, %s1163
                  %p1162 = scmp.ge.s32.totalorder %s1161, %s1157
                  %s1166 = sphi 0, %s1299
                  %s1167 = sphi %s501, %s1302
                  %s1168 = sphi %s943, %s1303
                $region154: #{accumulated_normalization.1} parent=150 // loop_header_branch
                  %1165 = sbr.rel (%p1162) target = $region158
                $region155: #{accumulated_normalization.1} parent=150 // loop_body
                  %v1169 = vld [vmem:[%s1167] sm:$0xff]
                  %1170 = vst [vmem:[%s1168] sm:$0xff] %v1169
                  %v1171 = vld [vmem:[%s1167 + $0x8] sm:$0xff]
                  %1172 = vst [vmem:[%s1168 + $0x8] sm:$0xff] %v1171
                  %v1173 = vld [vmem:[%s1167 + $0x10] sm:$0xff]
                  %1174 = vst [vmem:[%s1168 + $0x10] sm:$0xff] %v1173
                  %v1175 = vld [vmem:[%s1167 + $0x18] sm:$0xff]
                  %1176 = vst [vmem:[%s1168 + $0x18] sm:$0xff] %v1175
                  %v1177 = vld [vmem:[%s1167 + $0x20] sm:$0xff]
                  %1178 = vst [vmem:[%s1168 + $0x20] sm:$0xff] %v1177
                  %v1179 = vld [vmem:[%s1167 + $0x28] sm:$0xff]
                  %1180 = vst [vmem:[%s1168 + $0x28] sm:$0xff] %v1179
                  %v1181 = vld [vmem:[%s1167 + $0x30] sm:$0xff]
                  %1182 = vst [vmem:[%s1168 + $0x30] sm:$0xff] %v1181
                  %v1183 = vld [vmem:[%s1167 + $0x38] sm:$0xff]
                  %1184 = vst [vmem:[%s1168 + $0x38] sm:$0xff] %v1183
                  %v1185 = vld [vmem:[%s1167 + $0x40] sm:$0xff]
                  %1186 = vst [vmem:[%s1168 + $0x40] sm:$0xff] %v1185
                  %v1187 = vld [vmem:[%s1167 + $0x48] sm:$0xff]
                  %1188 = vst [vmem:[%s1168 + $0x48] sm:$0xff] %v1187
                  %v1189 = vld [vmem:[%s1167 + $0x50] sm:$0xff]
                  %1190 = vst [vmem:[%s1168 + $0x50] sm:$0xff] %v1189
                  %v1191 = vld [vmem:[%s1167 + $0x58] sm:$0xff]
                  %1192 = vst [vmem:[%s1168 + $0x58] sm:$0xff] %v1191
                  %v1193 = vld [vmem:[%s1167 + $0x60] sm:$0xff]
                  %1194 = vst [vmem:[%s1168 + $0x60] sm:$0xff] %v1193
                  %v1195 = vld [vmem:[%s1167 + $0x68] sm:$0xff]
                  %1196 = vst [vmem:[%s1168 + $0x68] sm:$0xff] %v1195
                  %v1197 = vld [vmem:[%s1167 + $0x70] sm:$0xff]
                  %1198 = vst [vmem:[%s1168 + $0x70] sm:$0xff] %v1197
                  %v1199 = vld [vmem:[%s1167 + $0x78] sm:$0xff]
                  %1200 = vst [vmem:[%s1168 + $0x78] sm:$0xff] %v1199
                  %v1201 = vld [vmem:[%s1167 + $0x80] sm:$0xff]
                  %1202 = vst [vmem:[%s1168 + $0x80] sm:$0xff] %v1201
                  %v1203 = vld [vmem:[%s1167 + $0x88] sm:$0xff]
                  %1204 = vst [vmem:[%s1168 + $0x88] sm:$0xff] %v1203
                  %v1205 = vld [vmem:[%s1167 + $0x90] sm:$0xff]
                  %1206 = vst [vmem:[%s1168 + $0x90] sm:$0xff] %v1205
                  %v1207 = vld [vmem:[%s1167 + $0x98] sm:$0xff]
                  %1208 = vst [vmem:[%s1168 + $0x98] sm:$0xff] %v1207
                  %v1209 = vld [vmem:[%s1167 + $0xa0] sm:$0xff]
                  %1210 = vst [vmem:[%s1168 + $0xa0] sm:$0xff] %v1209
                  %v1211 = vld [vmem:[%s1167 + $0xa8] sm:$0xff]
                  %1212 = vst [vmem:[%s1168 + $0xa8] sm:$0xff] %v1211
                  %v1213 = vld [vmem:[%s1167 + $0xb0] sm:$0xff]
                  %1214 = vst [vmem:[%s1168 + $0xb0] sm:$0xff] %v1213
                  %v1215 = vld [vmem:[%s1167 + $0xb8] sm:$0xff]
                  %1216 = vst [vmem:[%s1168 + $0xb8] sm:$0xff] %v1215
                  %v1217 = vld [vmem:[%s1167 + $0xc0] sm:$0xff]
                  %1218 = vst [vmem:[%s1168 + $0xc0] sm:$0xff] %v1217
                  %v1219 = vld [vmem:[%s1167 + $0xc8] sm:$0xff]
                  %1220 = vst [vmem:[%s1168 + $0xc8] sm:$0xff] %v1219
                  %v1221 = vld [vmem:[%s1167 + $0xd0] sm:$0xff]
                  %1222 = vst [vmem:[%s1168 + $0xd0] sm:$0xff] %v1221
                  %v1223 = vld [vmem:[%s1167 + $0xd8] sm:$0xff]
                  %1224 = vst [vmem:[%s1168 + $0xd8] sm:$0xff] %v1223
                  %v1225 = vld [vmem:[%s1167 + $0xe0] sm:$0xff]
                  %1226 = vst [vmem:[%s1168 + $0xe0] sm:$0xff] %v1225
                  %v1227 = vld [vmem:[%s1167 + $0xe8] sm:$0xff]
                  %1228 = vst [vmem:[%s1168 + $0xe8] sm:$0xff] %v1227
                  %v1229 = vld [vmem:[%s1167 + $0xf0] sm:$0xff]
                  %1230 = vst [vmem:[%s1168 + $0xf0] sm:$0xff] %v1229
                  %v1231 = vld [vmem:[%s1167 + $0xf8] sm:$0xff]
                  %1232 = vst [vmem:[%s1168 + $0xf8] sm:$0xff] %v1231
                  %v1233 = vld [vmem:[%s1167 + $0x100] sm:$0xff]
                  %1234 = vst [vmem:[%s1168 + $0x100] sm:$0xff] %v1233
                  %v1235 = vld [vmem:[%s1167 + $0x108] sm:$0xff]
                  %1236 = vst [vmem:[%s1168 + $0x108] sm:$0xff] %v1235
                  %v1237 = vld [vmem:[%s1167 + $0x110] sm:$0xff]
                  %1238 = vst [vmem:[%s1168 + $0x110] sm:$0xff] %v1237
                  %v1239 = vld [vmem:[%s1167 + $0x118] sm:$0xff]
                  %1240 = vst [vmem:[%s1168 + $0x118] sm:$0xff] %v1239
                  %v1241 = vld [vmem:[%s1167 + $0x120] sm:$0xff]
                  %1242 = vst [vmem:[%s1168 + $0x120] sm:$0xff] %v1241
                  %v1243 = vld [vmem:[%s1167 + $0x128] sm:$0xff]
                  %1244 = vst [vmem:[%s1168 + $0x128] sm:$0xff] %v1243
                  %v1245 = vld [vmem:[%s1167 + $0x130] sm:$0xff]
                  %1246 = vst [vmem:[%s1168 + $0x130] sm:$0xff] %v1245
                  %v1247 = vld [vmem:[%s1167 + $0x138] sm:$0xff]
                  %1248 = vst [vmem:[%s1168 + $0x138] sm:$0xff] %v1247
                  %v1249 = vld [vmem:[%s1167 + $0x140] sm:$0xff]
                  %1250 = vst [vmem:[%s1168 + $0x140] sm:$0xff] %v1249
                  %v1251 = vld [vmem:[%s1167 + $0x148] sm:$0xff]
                  %1252 = vst [vmem:[%s1168 + $0x148] sm:$0xff] %v1251
                  %v1253 = vld [vmem:[%s1167 + $0x150] sm:$0xff]
                  %1254 = vst [vmem:[%s1168 + $0x150] sm:$0xff] %v1253
                  %v1255 = vld [vmem:[%s1167 + $0x158] sm:$0xff]
                  %1256 = vst [vmem:[%s1168 + $0x158] sm:$0xff] %v1255
                  %v1257 = vld [vmem:[%s1167 + $0x160] sm:$0xff]
                  %1258 = vst [vmem:[%s1168 + $0x160] sm:$0xff] %v1257
                  %v1259 = vld [vmem:[%s1167 + $0x168] sm:$0xff]
                  %1260 = vst [vmem:[%s1168 + $0x168] sm:$0xff] %v1259
                  %v1261 = vld [vmem:[%s1167 + $0x170] sm:$0xff]
                  %1262 = vst [vmem:[%s1168 + $0x170] sm:$0xff] %v1261
                  %v1263 = vld [vmem:[%s1167 + $0x178] sm:$0xff]
                  %1264 = vst [vmem:[%s1168 + $0x178] sm:$0xff] %v1263
                  %v1265 = vld [vmem:[%s1167 + $0x180] sm:$0xff]
                  %1266 = vst [vmem:[%s1168 + $0x180] sm:$0xff] %v1265
                  %v1267 = vld [vmem:[%s1167 + $0x188] sm:$0xff]
                  %1268 = vst [vmem:[%s1168 + $0x188] sm:$0xff] %v1267
                  %v1269 = vld [vmem:[%s1167 + $0x190] sm:$0xff]
                  %1270 = vst [vmem:[%s1168 + $0x190] sm:$0xff] %v1269
                  %v1271 = vld [vmem:[%s1167 + $0x198] sm:$0xff]
                  %1272 = vst [vmem:[%s1168 + $0x198] sm:$0xff] %v1271
                  %v1273 = vld [vmem:[%s1167 + $0x1a0] sm:$0xff]
                  %1274 = vst [vmem:[%s1168 + $0x1a0] sm:$0xff] %v1273
                  %v1275 = vld [vmem:[%s1167 + $0x1a8] sm:$0xff]
                  %1276 = vst [vmem:[%s1168 + $0x1a8] sm:$0xff] %v1275
                  %v1277 = vld [vmem:[%s1167 + $0x1b0] sm:$0xff]
                  %1278 = vst [vmem:[%s1168 + $0x1b0] sm:$0xff] %v1277
                  %v1279 = vld [vmem:[%s1167 + $0x1b8] sm:$0xff]
                  %1280 = vst [vmem:[%s1168 + $0x1b8] sm:$0xff] %v1279
                  %v1281 = vld [vmem:[%s1167 + $0x1c0] sm:$0xff]
                  %1282 = vst [vmem:[%s1168 + $0x1c0] sm:$0xff] %v1281
                  %v1283 = vld [vmem:[%s1167 + $0x1c8] sm:$0xff]
                  %1284 = vst [vmem:[%s1168 + $0x1c8] sm:$0xff] %v1283
                  %v1285 = vld [vmem:[%s1167 + $0x1d0] sm:$0xff]
                  %1286 = vst [vmem:[%s1168 + $0x1d0] sm:$0xff] %v1285
                  %v1287 = vld [vmem:[%s1167 + $0x1d8] sm:$0xff]
                  %1288 = vst [vmem:[%s1168 + $0x1d8] sm:$0xff] %v1287
                  %v1289 = vld [vmem:[%s1167 + $0x1e0] sm:$0xff]
                  %1290 = vst [vmem:[%s1168 + $0x1e0] sm:$0xff] %v1289
                  %v1291 = vld [vmem:[%s1167 + $0x1e8] sm:$0xff]
                  %1292 = vst [vmem:[%s1168 + $0x1e8] sm:$0xff] %v1291
                  %v1293 = vld [vmem:[%s1167 + $0x1f0] sm:$0xff]
                  %1294 = vst [vmem:[%s1168 + $0x1f0] sm:$0xff] %v1293
                  %v1295 = vld [vmem:[%s1167 + $0x1f8] sm:$0xff]
                  %1296 = vst [vmem:[%s1168 + $0x1f8] sm:$0xff] %v1295
                  %s1297 = sadd.s32 1, %s1166
                  %p1298 = scmp.ge.s32.totalorder %s1297, %s1157
                  %s1299 = scalar_select %p1298, 0, %s1297
                  %s1300 = smul.u32 %s1299, 512
                  %s1301 = smul.u32 %s1299, 512
                  %s1302 = scalar_lea.vmem %s501, %s1300 [#allocation6]
                  %s1303 = scalar_lea.vmem %s943, %s1301
                $region156: #{accumulated_normalization.1} parent=150 // loop_footer
                  %s1163 = sadd.s32 %s1161, 1
                $region157: #{accumulated_normalization.1} parent=150 // loop_footer_branch
                  %1160 = sbr.rel target = $region153
                $region158: #{accumulated_normalization.1} parent=150 // loop_exit
                  _
                %s1304 = sshrl.u32 %s1156, 6
                %s1305 = sand.u32 %s1156, 63
                %s1306 = smul.u32 %s1304, 64
                %s1307 = smul.u32 128, %s1306
                %s1308 = sshra.s32 %s1307, 4
                %s1309 = scalar_lea.vmem %s501, %s1308 [#allocation6]
                %s1310 = smul.u32 128, %s1306
                %s1311 = sshra.s32 %s1310, 4
                %s1312 = scalar_lea.vmem %s943, %s1311
                // While loop
                $region159: #{accumulated_normalization.1} parent=150 // loop_pre_header
                  _
                $region160: #{accumulated_normalization.1} parent=150 // loop_header
                  %s1316 = sphi 0, %s1318
                  %p1317 = scmp.ge.s32.totalorder %s1316, %s1305
                  %s1321 = sphi 0, %s1328
                  %s1322 = sphi %s1309, %s1331
                  %s1323 = sphi %s1312, %s1332
                $region161: #{accumulated_normalization.1} parent=150 // loop_header_branch
                  %1320 = sbr.rel (%p1317) target = $region165
                $region162: #{accumulated_normalization.1} parent=150 // loop_body
                  %v1324 = vld [vmem:[%s1322] sm:$0xff]
                  %1325 = vst [vmem:[%s1323] sm:$0xff] %v1324
                  %s1326 = sadd.s32 1, %s1321
                  %p1327 = scmp.ge.s32.totalorder %s1326, %s1305
                  %s1328 = scalar_select %p1327, 0, %s1326
                  %s1329 = smul.u32 %s1328, 8
                  %s1330 = smul.u32 %s1328, 8
                  %s1331 = scalar_lea.vmem %s1309, %s1329 [#allocation6]
                  %s1332 = scalar_lea.vmem %s1312, %s1330
                $region163: #{accumulated_normalization.1} parent=150 // loop_footer
                  %s1318 = sadd.s32 %s1316, 1
                $region164: #{accumulated_normalization.1} parent=150 // loop_footer_branch
                  %1315 = sbr.rel target = $region160
                $region165: #{accumulated_normalization.1} parent=150 // loop_exit
                  _
                %s1333 = sshll.u32 1, %s1151
                %s1334 = ssub.s32 %s1333, 1
                loop: start=0, step=1, limit=1
                $region166: #{accumulated_normalization.1} parent=150 // loop_pre_header
                  _
                $region167: #{accumulated_normalization.1} parent=150 // loop_header
                  %s1336 = sphi 0, %s1340
                  %p1337 = scmp.ge.s32.totalorder %s1336, 1
                  %s1341 = sphi %s1153, %s1153
                  %s1342 = sphi %s1155, %s1155
                $region168: #{accumulated_normalization.1} parent=150 // loop_header_branch
                  %1339 = sbr.rel (%p1337) target = $region172
                $region169: #{accumulated_normalization.1} parent=150 // loop_body
                  %v1343 = vld [vmem:[%s1341] sm:%s1334]
                  %1344 = vst [vmem:[%s1342] sm:%s1334] %v1343
                $region170: #{accumulated_normalization.1} parent=150 // loop_footer
                  %s1340 = sadd.s32 1, %s1336
                $region171: #{accumulated_normalization.1} parent=150 // loop_footer_branch
                  %1335 = sbr.rel target = $region167
                $region172: #{accumulated_normalization.1} parent=150 // loop_exit
                  _
              $region151: #{accumulated_normalization.1} parent=117 // pred_fallthru
                _
            $region118: #{accumulated_normalization.1} parent=113 // pred_fallthru
              _
            // Predicated region
            $region119: #{accumulated_normalization.1} parent=113 // pred_check
              %p951 = pneg %p947
            $region120: #{accumulated_normalization.1} parent=113 // pred_check_branch
              %953 = sbr.rel (%p951) target = $region122
            $region121: #{accumulated_normalization.1} parent=113 // pred_region
              %s954 = sshll.u32 1, %s940
              %s955 = ssub.s32 %s954, 1
              loop: start=0, step=1, limit=1
              $region123: #{accumulated_normalization.1} parent=121 // loop_pre_header
                _
              $region124: #{accumulated_normalization.1} parent=121 // loop_header
                %s957 = sphi 0, %s961
                %p958 = scmp.ge.s32.totalorder %s957, 1
                %s962 = sphi %s501, %s501
                %s963 = sphi %s943, %s943
              $region125: #{accumulated_normalization.1} parent=121 // loop_header_branch
                %960 = sbr.rel (%p958) target = $region129
              $region126: #{accumulated_normalization.1} parent=121 // loop_body
                %v964 = vld [vmem:[%s962] sm:%s955]
                %965 = vst [vmem:[%s963] sm:%s955] %v964
              $region127: #{accumulated_normalization.1} parent=121 // loop_footer
                %s961 = sadd.s32 1, %s957
              $region128: #{accumulated_normalization.1} parent=121 // loop_footer_branch
                %956 = sbr.rel target = $region124
              $region129: #{accumulated_normalization.1} parent=121 // loop_exit
                _
            $region122: #{accumulated_normalization.1} parent=113 // pred_fallthru
              _
          $region114: #{accumulated_normalization.1} parent=109 // pred_fallthru
            _
          %1345 = vnop
        $region110: #{accumulated_normalization.1} parent=35 // pred_fallthru
          _
      $region36: #{accumulated_normalization.1} parent=5 // pred_fallthru
        _
      %p1346 = scmp.le.s32.totalorder 2, %s17
      // Predicated region
      $region173: #{accumulated_normalization.1} parent=5 // pred_check
        %p1347 = pneg %p1346
      $region174: #{accumulated_normalization.1} parent=5 // pred_check_branch
        %1349 = sbr.rel (%p1347) target = $region176
      $region175: #{accumulated_normalization.1} parent=5 // pred_region
        %s1350 = ssub.s32 %s17, 2
        // Predicated region
        $region177: #{accumulated_normalization.1} parent=175 // pred_check
          %p1351 = pneg %p145
        $region178: #{accumulated_normalization.1} parent=175 // pred_check_branch
          %1353 = sbr.rel (%p1351) target = $region180
        $region179: #{accumulated_normalization.1} parent=175 // pred_region
          %s1354 = sand.u32 %s130, 1
          %s1355 = scalar_lea.sflag [#allocation4], %s1354
          %s1356 = sand.u32 %s130, 1
          %s1357 = smul.addr %s1356, 16
          %s1358 = scalar_lea.vmem [#allocation3], %s1357
          %1359 = dma.done %s1355, 256
        $region180: #{accumulated_normalization.1} parent=175 // pred_fallthru
          _
        // Predicated region
        $region181: #{accumulated_normalization.1} parent=175 // pred_check
          %p1360 = pneg %p171
        $region182: #{accumulated_normalization.1} parent=175 // pred_check_branch
          %1362 = sbr.rel (%p1360) target = $region184
        $region183: #{accumulated_normalization.1} parent=175 // pred_region
          %s1363 = sand.u32 %s156, 1
          %s1364 = sand.u32 %s156, 1
          %s1365 = smul.addr %s1364, 2
          %s1366 = scalar_lea.vmem [#allocation5], %s1365
        $region184: #{accumulated_normalization.1} parent=175 // pred_fallthru
          _
        // Predicated region
        $region185: #{accumulated_normalization.1} parent=175 // pred_check
          %p1367 = pneg %p197
        $region186: #{accumulated_normalization.1} parent=175 // pred_check_branch
          %1369 = sbr.rel (%p1367) target = $region188
        $region187: #{accumulated_normalization.1} parent=175 // pred_region
          %s1370 = sand.u32 %s182, 1
          %s1371 = sand.u32 %s182, 1
          %s1372 = smul.addr %s1371, 2
          %s1373 = scalar_lea.vmem [#allocation6], %s1372
        $region188: #{accumulated_normalization.1} parent=175 // pred_fallthru
          _
      $region176: #{accumulated_normalization.1} parent=5 // pred_fallthru
        _
    $region6: #{accumulated_normalization.1} parent=1 // loop_footer
      %s21 = sadd.s32 1, %s17
    $region7: #{accumulated_normalization.1} parent=1 // loop_footer_branch
      %16 = sbr.rel target = $region3
    $region8: #{accumulated_normalization.1} parent=1 // loop_exit
      _
    %1374 = vsyncpa [#allocation4], 1
    %s1375 = scalar_lea.sflag [#allocation4], 1
    %1376 = vsyncpa %s1375, 1

</llo_original>
